<compile_context>
chip_gen: v7x
topology: tpu7x:2x2x1
jax: 0.10.0
libtpu: 0.0.40
codegen_flags: <defaults>
</compile_context>

<pallas_src>
import functools

import jax
import jax.numpy as jnp
from jax.experimental import pallas as pl
from jax.experimental.pallas import tpu as pltpu

_TAPS = tuple((dh, dw) for dh in (-1, 0, 1) for dw in (-1, 0, 1))


# ----------------------------------------------------------------------------
# Fused RepC3 kernel: one grid step == one image, layout (C, H*W).
#   x_ref   : (1, c1, HW)    f32   flattened image, channels on sublanes
#   mask_ref: (9, c2, HW)    f32   0/1 border mask per 3x3 tap
#   w1/w2   : (c2, c1)       bf16  cv1 / cv2 1x1 weights (BN scale folded)
#   b1/b2   : (c2, 1)        f32   folded BN biases
#   w3      : (9*n, c2, c2)  bf16  RepConv 3x3 weights, tap-major, BN folded,
#                                  1x1 branch folded into the center tap
#   b3      : (n, c2, 1)     f32   combined RepConv biases (b3x3 + b1x1)
#   o_ref   : (1, c2, HW)    f32
# ----------------------------------------------------------------------------
def _repc3_fused_kernel(x_ref, mask_ref, w1_ref, b1_ref, w2_ref, b2_ref,
                        w3_ref, b3_ref, o_ref, *, W):
    c2 = o_ref.shape[1]
    HW = o_ref.shape[2]
    n = b3_ref.shape[0]

    # --- cv1 / cv2: 1x1 conv + folded-BN bias + SiLU on the shared x tile ----
    xb = x_ref[0].astype(jnp.bfloat16)                                   # (c1, HW)
    y1 = jnp.dot(w1_ref[...], xb, preferred_element_type=jnp.float32) + b1_ref[...]
    y1 = y1 * jax.nn.sigmoid(y1)                                         # f32 SiLU
    y2 = jnp.dot(w2_ref[...], xb, preferred_element_type=jnp.float32) + b2_ref[...]
    y2 = y2 * jax.nn.sigmoid(y2)                                         # live for residual

    # --- n RepConvs: SiLU(conv3x3(y)), 1x1 branch already in the center tap --
    y = y1
    for i in range(n):
        acc = jnp.zeros((c2, HW), jnp.float32)
        for t, (dh, dw) in enumerate(_TAPS):
            d = dh * W + dw                              # flat-index shift of this tap
            if d == 0:
                shifted = y                              # center tap: no shift, no mask
            else:
                shifted = pltpu.roll(y, (-d) % HW, axis=1)   # shifted[p] = y[p + d]
                shifted = shifted * mask_ref[t]              # zero out-of-image taps
            acc = acc + jnp.dot(w3_ref[i * 9 + t], shifted.astype(jnp.bfloat16),
                                preferred_element_type=jnp.float32)
        acc = acc + b3_ref[i]                                            # (c2,1) bcast
        y = acc * jax.nn.sigmoid(acc)                                    # f32 SiLU

    # --- fused residual add (cv3 == Identity) + lane-dense store -------------
    o_ref[0] = (y + y2).astype(o_ref.dtype)


# ----------------------------------------------------------------------------
# 0/1 border masks for the 9 taps of a padded 3x3 conv, in (tap, c2, HW) layout.
# Computed once in plain XLA; resident in VMEM across the whole grid.
# ----------------------------------------------------------------------------
def _make_tap_masks(H, W, c2):
    pos = jnp.arange(H * W, dtype=jnp.int32)
    hh = pos // W
    ww = pos % W
    masks = []
    for dh, dw in _TAPS:
        valid = ((hh + dh >= 0) & (hh + dh < H) & (ww + dw >= 0) & (ww + dw < W))
        masks.append(valid)
    m = jnp.stack(masks, axis=0).astype(jnp.float32)               # (9, HW)
    return jnp.broadcast_to(m[:, None, :], (9, c2, H * W))


# ----------------------------------------------------------------------------
# Parameter construction (deterministic, BN folded, RepConv re-parameterized)
# ----------------------------------------------------------------------------
def _bn_fold(key, cout, eps=1e-3):
    k1, k2, k3, k4 = jax.random.split(key, 4)
    gamma = jax.random.uniform(k1, (cout,), jnp.float32, 0.5, 1.5)
    beta = 0.1 * jax.random.normal(k2, (cout,), jnp.float32)
    mean = 0.1 * jax.random.normal(k3, (cout,), jnp.float32)
    var = jax.random.uniform(k4, (cout,), jnp.float32, 0.5, 1.5)
    scale = gamma / jnp.sqrt(var + eps)
    bias = beta - mean * scale
    return scale, bias


def make_repc3_params(key, c1, c2, n=3):
    keys = jax.random.split(key, 2 + 2 * n)
    params = {}

    # cv1 / cv2: 1x1 conv (c1 -> c2) + BN (+ SiLU in kernel)
    for name, k in (("cv1", keys[0]), ("cv2", keys[1])):
        kw, kbn = jax.random.split(k)
        w = 0.1 * jax.random.normal(kw, (c2, c1), jnp.float32)          # (Cout, Cin)
        scale, bias = _bn_fold(kbn, c2)
        params[f"{name}_w"] = (w * scale[:, None]).astype(jnp.bfloat16)
        params[f"{name}_b"] = bias[:, None]                             # (c2, 1) f32

    # RepConv blocks: 3x3+BN and 1x1+BN, 1x1 folded into center tap, biases summed
    w3_all, b_all = [], []
    for i in range(n):
        k3x3, k1x1 = keys[2 + 2 * i], keys[3 + 2 * i]
        kw3, kbn3 = jax.random.split(k3x3)
        kw1, kbn1 = jax.random.split(k1x1)
        w3 = 0.1 * jax.random.normal(kw3, (3, 3, c2, c2), jnp.float32)  # (kh,kw,out,in)
        s3, b3 = _bn_fold(kbn3, c2)
        w1 = 0.1 * jax.random.normal(kw1, (c2, c2), jnp.float32)        # (out,in)
        s1, b1 = _bn_fold(kbn1, c2)
        w3 = w3 * s3[None, None, :, None]
        w1 = w1 * s1[:, None]
        w3 = w3.at[1, 1].add(w1)                     # fold 1x1 branch into center tap
        w3_all.append(w3.reshape(9, c2, c2))
        b_all.append((b3 + b1)[:, None])             # (c2, 1)
    params["rep_w3"] = jnp.concatenate(w3_all, axis=0).astype(jnp.bfloat16)  # (9n,c2,c2)
    params["rep_b"] = jnp.stack(b_all, axis=0)                               # (n,c2,1)
    return params


# ----------------------------------------------------------------------------
# Full RepC3 forward (cv3 == Identity since e=1.0): one pallas_call, grid=(N,)
# ----------------------------------------------------------------------------
@jax.jit
def repc3_forward(x_nchw, params):
    N, c1, H, W = x_nchw.shape
    c2 = params["cv1_b"].shape[0]
    n = params["rep_b"].shape[0]
    HW = H * W

    x = x_nchw.reshape(N, c1, HW)                   # NCHW -> (N, C, HW): free reshape
    tap_mask = _make_tap_masks(H, W, c2)

    out = pl.pallas_call(
        functools.partial(_repc3_fused_kernel, W=W),
        out_shape=jax.ShapeDtypeStruct((N, c2, HW), jnp.float32),
        grid=(N,),
        in_specs=[
            pl.BlockSpec((1, c1, HW), lambda b: (b, 0, 0)),
            pl.BlockSpec((9, c2, HW), lambda b: (0, 0, 0)),
            pl.BlockSpec((c2, c1), lambda b: (0, 0)),
            pl.BlockSpec((c2, 1), lambda b: (0, 0)),
            pl.BlockSpec((c2, c1), lambda b: (0, 0)),
            pl.BlockSpec((c2, 1), lambda b: (0, 0)),
            pl.BlockSpec((9 * n, c2, c2), lambda b: (0, 0, 0)),
            pl.BlockSpec((n, c2, 1), lambda b: (0, 0, 0)),
        ],
        out_specs=pl.BlockSpec((1, c2, HW), lambda b: (b, 0, 0)),
        compiler_params=pltpu.CompilerParams(dimension_semantics=("parallel",)),
    )(x, tap_mask, params["cv1_w"], params["cv1_b"], params["cv2_w"],
      params["cv2_b"], params["rep_w3"], params["rep_b"])

    return out.reshape(N, c2, H, W)                 # (N, C, HW) -> NCHW: free reshape


# ----------------------------------------------------------------------------
# Pure-JAX reference (f32, highest matmul precision) for correctness checking.
# ----------------------------------------------------------------------------
def repc3_reference(x_nchw, params):
    N, c1, H, W = x_nchw.shape
    c2 = params["cv1_b"].shape[0]
    n = params["rep_b"].shape[0]
    HW = H * W
    hp = jax.lax.Precision.HIGHEST
    silu = lambda v: v * jax.nn.sigmoid(v)

    xf = x_nchw.reshape(N, c1, HW).astype(jnp.float32)
    w1 = params["cv1_w"].astype(jnp.float32)
    w2 = params["cv2_w"].astype(jnp.float32)
    y1 = silu(jnp.einsum("oi,nip->nop", w1, xf, precision=hp) + params["cv1_b"][None])
    y2 = silu(jnp.einsum("oi,nip->nop", w2, xf, precision=hp) + params["cv2_b"][None])

    w3 = params["rep_w3"].astype(jnp.float32).reshape(n, 3, 3, c2, c2)
    y = y1
    for i in range(n):
        ypad = jnp.pad(y.reshape(N, c2, H, W), ((0, 0), (0, 0), (1, 1), (1, 1)))
        acc = jnp.zeros((N, c2, HW), jnp.float32)
        for kh in range(3):
            for kw in range(3):
                patch = ypad[:, :, kh:kh + H, kw:kw + W].reshape(N, c2, HW)
                acc = acc + jnp.einsum("oi,nip->nop", w3[i, kh, kw], patch, precision=hp)
        acc = acc + params["rep_b"][i][None]
        y = silu(acc)
    return (y + y2).reshape(N, c2, H, W)


if __name__ == "__main__":
    key = jax.random.PRNGKey(0)
    kx, kp = jax.random.split(key)

    N, C1, C2, H, W = 2, 4, 8, 16, 16
    x = jax.random.normal(kx, (N, C1, H, W), jnp.float32)
    params = make_repc3_params(kp, C1, C2, n=3)

    out = jax.block_until_ready(repc3_forward(x, params))
    assert out.shape == (N, C2, H, W), out.shape
    assert bool(jnp.all(jnp.isfinite(out)))

    ref = repc3_reference(x, params)
    max_err = float(jnp.max(jnp.abs(out - ref)))
    assert max_err < 3e-2, f"max abs error vs reference: {max_err}"
    print("KERNEL_OK")
</pallas_src>

<mosaic_0001>
module attributes {stable_mosaic.version = 11 : i64} {
  func.func @_repc3_fused_kernel(%arg0: i32, %arg1: memref<1x4x256xf32, #tpu.memory_space<vmem>>, %arg2: memref<9x8x256xf32, #tpu.memory_space<vmem>>, %arg3: memref<8x4xbf16, #tpu.memory_space<vmem>>, %arg4: memref<8x1xf32, #tpu.memory_space<vmem>>, %arg5: memref<8x4xbf16, #tpu.memory_space<vmem>>, %arg6: memref<8x1xf32, #tpu.memory_space<vmem>>, %arg7: memref<27x8x8xbf16, #tpu.memory_space<vmem>>, %arg8: memref<3x8x1xf32, #tpu.memory_space<vmem>>, %arg9: memref<1x8x256xf32, #tpu.memory_space<vmem>>) attributes {dimension_semantics = [#tpu.dimension_semantics<parallel>], iteration_bounds = array<i64: 2>, scalar_prefetch = 0 : i64, scratch_operands = 0 : i64, tpu.core_type = #tpu.core_type<tc>, window_params = [{transform_indices = @transform_0, window_bounds = array<i64: 1, 4, 256>}, {pipeline_mode = #tpu.pipeline_mode<synchronous>, transform_indices = @transform_1, window_bounds = array<i64: 9, 8, 256>}, {pipeline_mode = #tpu.pipeline_mode<synchronous>, transform_indices = @transform_2, window_bounds = array<i64: 8, 4>}, {pipeline_mode = #tpu.pipeline_mode<synchronous>, transform_indices = @transform_3, window_bounds = array<i64: 8, 1>}, {pipeline_mode = #tpu.pipeline_mode<synchronous>, transform_indices = @transform_4, window_bounds = array<i64: 8, 4>}, {pipeline_mode = #tpu.pipeline_mode<synchronous>, transform_indices = @transform_5, window_bounds = array<i64: 8, 1>}, {pipeline_mode = #tpu.pipeline_mode<synchronous>, transform_indices = @transform_6, window_bounds = array<i64: 27, 8, 8>}, {pipeline_mode = #tpu.pipeline_mode<synchronous>, transform_indices = @transform_7, window_bounds = array<i64: 3, 8, 1>}, {transform_indices = @transform_8, window_bounds = array<i64: 1, 8, 256>}]} {
    %c0 = arith.constant 0 : index
    %c0_0 = arith.constant 0 : index
    %c0_1 = arith.constant 0 : index
    %0 = vector.load %arg1[%c0, %c0_0, %c0_1] : memref<1x4x256xf32, #tpu.memory_space<vmem>>, vector<1x4x256xf32>
    %1 = vector.shape_cast %0 : vector<1x4x256xf32> to vector<4x256xf32>
    %2 = arith.truncf %1 : vector<4x256xf32> to vector<4x256xbf16>
    %c0_2 = arith.constant 0 : index
    %c0_3 = arith.constant 0 : index
    %3 = vector.load %arg3[%c0_2, %c0_3] : memref<8x4xbf16, #tpu.memory_space<vmem>>, vector<8x4xbf16>
    %cst = arith.constant dense<0.000000e+00> : vector<8x256xf32>
    %4 = tpu.matmul %3, %2, %cst {dimension_numbers = #tpu.dot_dimension_numbers<[1], [0], [0], [1], [0, 0, 1, 1], [], []>} : vector<8x4xbf16>, vector<4x256xbf16>, vector<8x256xf32> -> vector<8x256xf32>
    %c0_4 = arith.constant 0 : index
    %c0_5 = arith.constant 0 : index
    %5 = vector.load %arg4[%c0_4, %c0_5] : memref<8x1xf32, #tpu.memory_space<vmem>>, vector<8x1xf32>
    %6 = vector.broadcast %5 : vector<8x1xf32> to vector<8x256xf32>
    %7 = arith.addf %4, %6 : vector<8x256xf32>
    %8 = arith.negf %7 : vector<8x256xf32>
    %9 = math.exp %8 : vector<8x256xf32>
    %cst_6 = arith.constant 1.000000e+00 : f32
    %10 = vector.broadcast %cst_6 : f32 to vector<8x256xf32>
    %11 = arith.addf %10, %9 : vector<8x256xf32>
    %12 = arith.divf %10, %11 : vector<8x256xf32>
    %13 = arith.mulf %7, %12 : vector<8x256xf32>
    %c0_7 = arith.constant 0 : index
    %c0_8 = arith.constant 0 : index
    %14 = vector.load %arg5[%c0_7, %c0_8] : memref<8x4xbf16, #tpu.memory_space<vmem>>, vector<8x4xbf16>
    %cst_9 = arith.constant dense<0.000000e+00> : vector<8x256xf32>
    %15 = tpu.matmul %14, %2, %cst_9 {dimension_numbers = #tpu.dot_dimension_numbers<[1], [0], [0], [1], [0, 0, 1, 1], [], []>} : vector<8x4xbf16>, vector<4x256xbf16>, vector<8x256xf32> -> vector<8x256xf32>
    %c0_10 = arith.constant 0 : index
    %c0_11 = arith.constant 0 : index
    %16 = vector.load %arg6[%c0_10, %c0_11] : memref<8x1xf32, #tpu.memory_space<vmem>>, vector<8x1xf32>
    %17 = vector.broadcast %16 : vector<8x1xf32> to vector<8x256xf32>
    %18 = arith.addf %15, %17 : vector<8x256xf32>
    %19 = arith.negf %18 : vector<8x256xf32>
    %20 = math.exp %19 : vector<8x256xf32>
    %cst_12 = arith.constant 1.000000e+00 : f32
    %21 = vector.broadcast %cst_12 : f32 to vector<8x256xf32>
    %22 = arith.addf %21, %20 : vector<8x256xf32>
    %23 = arith.divf %21, %22 : vector<8x256xf32>
    %24 = arith.mulf %18, %23 : vector<8x256xf32>
    %cst_13 = arith.constant 0.000000e+00 : f32
    %25 = vector.broadcast %cst_13 : f32 to vector<8x256xf32>
    %c17_i32 = arith.constant 17 : i32
    %26 = tpu.dynamic_rotate %13 by %c17_i32 dim 1 : vector<8x256xf32>, i32 -> vector<8x256xf32>
    %c0_14 = arith.constant 0 : index
    %c0_15 = arith.constant 0 : index
    %c0_16 = arith.constant 0 : index
    %27 = vector.load %arg2[%c0_14, %c0_15, %c0_16] : memref<9x8x256xf32, #tpu.memory_space<vmem>>, vector<1x8x256xf32>
    %28 = vector.shape_cast %27 : vector<1x8x256xf32> to vector<8x256xf32>
    %29 = arith.mulf %26, %28 : vector<8x256xf32>
    %c0_17 = arith.constant 0 : index
    %c0_18 = arith.constant 0 : index
    %c0_19 = arith.constant 0 : index
    %30 = vector.load %arg7[%c0_17, %c0_18, %c0_19] : memref<27x8x8xbf16, #tpu.memory_space<vmem>>, vector<1x8x8xbf16>
    %31 = vector.shape_cast %30 : vector<1x8x8xbf16> to vector<8x8xbf16>
    %32 = arith.truncf %29 : vector<8x256xf32> to vector<8x256xbf16>
    %cst_20 = arith.constant dense<0.000000e+00> : vector<8x256xf32>
    %33 = tpu.matmul %31, %32, %cst_20 {dimension_numbers = #tpu.dot_dimension_numbers<[1], [0], [0], [1], [0, 0, 1, 1], [], []>} : vector<8x8xbf16>, vector<8x256xbf16>, vector<8x256xf32> -> vector<8x256xf32>
    %34 = arith.addf %25, %33 : vector<8x256xf32>
    %c16_i32 = arith.constant 16 : i32
    %35 = tpu.dynamic_rotate %13 by %c16_i32 dim 1 : vector<8x256xf32>, i32 -> vector<8x256xf32>
    %c1 = arith.constant 1 : index
    %c0_21 = arith.constant 0 : index
    %c0_22 = arith.constant 0 : index
    %36 = vector.load %arg2[%c1, %c0_21, %c0_22] : memref<9x8x256xf32, #tpu.memory_space<vmem>>, vector<1x8x256xf32>
    %37 = vector.shape_cast %36 : vector<1x8x256xf32> to vector<8x256xf32>
    %38 = arith.mulf %35, %37 : vector<8x256xf32>
    %c1_23 = arith.constant 1 : index
    %c0_24 = arith.constant 0 : index
    %c0_25 = arith.constant 0 : index
    %39 = vector.load %arg7[%c1_23, %c0_24, %c0_25] : memref<27x8x8xbf16, #tpu.memory_space<vmem>>, vector<1x8x8xbf16>
    %40 = vector.shape_cast %39 : vector<1x8x8xbf16> to vector<8x8xbf16>
    %41 = arith.truncf %38 : vector<8x256xf32> to vector<8x256xbf16>
    %cst_26 = arith.constant dense<0.000000e+00> : vector<8x256xf32>
    %42 = tpu.matmul %40, %41, %cst_26 {dimension_numbers = #tpu.dot_dimension_numbers<[1], [0], [0], [1], [0, 0, 1, 1], [], []>} : vector<8x8xbf16>, vector<8x256xbf16>, vector<8x256xf32> -> vector<8x256xf32>
    %43 = arith.addf %34, %42 : vector<8x256xf32>
    %c15_i32 = arith.constant 15 : i32
    %44 = tpu.dynamic_rotate %13 by %c15_i32 dim 1 : vector<8x256xf32>, i32 -> vector<8x256xf32>
    %c2 = arith.constant 2 : index
    %c0_27 = arith.constant 0 : index
    %c0_28 = arith.constant 0 : index
    %45 = vector.load %arg2[%c2, %c0_27, %c0_28] : memref<9x8x256xf32, #tpu.memory_space<vmem>>, vector<1x8x256xf32>
    %46 = vector.shape_cast %45 : vector<1x8x256xf32> to vector<8x256xf32>
    %47 = arith.mulf %44, %46 : vector<8x256xf32>
    %c2_29 = arith.constant 2 : index
    %c0_30 = arith.constant 0 : index
    %c0_31 = arith.constant 0 : index
    %48 = vector.load %arg7[%c2_29, %c0_30, %c0_31] : memref<27x8x8xbf16, #tpu.memory_space<vmem>>, vector<1x8x8xbf16>
    %49 = vector.shape_cast %48 : vector<1x8x8xbf16> to vector<8x8xbf16>
    %50 = arith.truncf %47 : vector<8x256xf32> to vector<8x256xbf16>
    %cst_32 = arith.constant dense<0.000000e+00> : vector<8x256xf32>
    %51 = tpu.matmul %49, %50, %cst_32 {dimension_numbers = #tpu.dot_dimension_numbers<[1], [0], [0], [1], [0, 0, 1, 1], [], []>} : vector<8x8xbf16>, vector<8x256xbf16>, vector<8x256xf32> -> vector<8x256xf32>
    %52 = arith.addf %43, %51 : vector<8x256xf32>
    %c1_i32 = arith.constant 1 : i32
    %53 = tpu.dynamic_rotate %13 by %c1_i32 dim 1 : vector<8x256xf32>, i32 -> vector<8x256xf32>
    %c3 = arith.constant 3 : index
    %c0_33 = arith.constant 0 : index
    %c0_34 = arith.constant 0 : index
    %54 = vector.load %arg2[%c3, %c0_33, %c0_34] : memref<9x8x256xf32, #tpu.memory_space<vmem>>, vector<1x8x256xf32>
    %55 = vector.shape_cast %54 : vector<1x8x256xf32> to vector<8x256xf32>
    %56 = arith.mulf %53, %55 : vector<8x256xf32>
    %c3_35 = arith.constant 3 : index
    %c0_36 = arith.constant 0 : index
    %c0_37 = arith.constant 0 : index
    %57 = vector.load %arg7[%c3_35, %c0_36, %c0_37] : memref<27x8x8xbf16, #tpu.memory_space<vmem>>, vector<1x8x8xbf16>
    %58 = vector.shape_cast %57 : vector<1x8x8xbf16> to vector<8x8xbf16>
    %59 = arith.truncf %56 : vector<8x256xf32> to vector<8x256xbf16>
    %cst_38 = arith.constant dense<0.000000e+00> : vector<8x256xf32>
    %60 = tpu.matmul %58, %59, %cst_38 {dimension_numbers = #tpu.dot_dimension_numbers<[1], [0], [0], [1], [0, 0, 1, 1], [], []>} : vector<8x8xbf16>, vector<8x256xbf16>, vector<8x256xf32> -> vector<8x256xf32>
    %61 = arith.addf %52, %60 : vector<8x256xf32>
    %c4 = arith.constant 4 : index
    %c0_39 = arith.constant 0 : index
    %c0_40 = arith.constant 0 : index
    %62 = vector.load %arg7[%c4, %c0_39, %c0_40] : memref<27x8x8xbf16, #tpu.memory_space<vmem>>, vector<1x8x8xbf16>
    %63 = vector.shape_cast %62 : vector<1x8x8xbf16> to vector<8x8xbf16>
    %64 = arith.truncf %13 : vector<8x256xf32> to vector<8x256xbf16>
    %cst_41 = arith.constant dense<0.000000e+00> : vector<8x256xf32>
    %65 = tpu.matmul %63, %64, %cst_41 {dimension_numbers = #tpu.dot_dimension_numbers<[1], [0], [0], [1], [0, 0, 1, 1], [], []>} : vector<8x8xbf16>, vector<8x256xbf16>, vector<8x256xf32> -> vector<8x256xf32>
    %66 = arith.addf %61, %65 : vector<8x256xf32>
    %c255_i32 = arith.constant 255 : i32
    %67 = tpu.dynamic_rotate %13 by %c255_i32 dim 1 : vector<8x256xf32>, i32 -> vector<8x256xf32>
    %c5 = arith.constant 5 : index
    %c0_42 = arith.constant 0 : index
    %c0_43 = arith.constant 0 : index
    %68 = vector.load %arg2[%c5, %c0_42, %c0_43] : memref<9x8x256xf32, #tpu.memory_space<vmem>>, vector<1x8x256xf32>
    %69 = vector.shape_cast %68 : vector<1x8x256xf32> to vector<8x256xf32>
    %70 = arith.mulf %67, %69 : vector<8x256xf32>
    %c5_44 = arith.constant 5 : index
    %c0_45 = arith.constant 0 : index
    %c0_46 = arith.constant 0 : index
    %71 = vector.load %arg7[%c5_44, %c0_45, %c0_46] : memref<27x8x8xbf16, #tpu.memory_space<vmem>>, vector<1x8x8xbf16>
    %72 = vector.shape_cast %71 : vector<1x8x8xbf16> to vector<8x8xbf16>
    %73 = arith.truncf %70 : vector<8x256xf32> to vector<8x256xbf16>
    %cst_47 = arith.constant dense<0.000000e+00> : vector<8x256xf32>
    %74 = tpu.matmul %72, %73, %cst_47 {dimension_numbers = #tpu.dot_dimension_numbers<[1], [0], [0], [1], [0, 0, 1, 1], [], []>} : vector<8x8xbf16>, vector<8x256xbf16>, vector<8x256xf32> -> vector<8x256xf32>
    %75 = arith.addf %66, %74 : vector<8x256xf32>
    %c241_i32 = arith.constant 241 : i32
    %76 = tpu.dynamic_rotate %13 by %c241_i32 dim 1 : vector<8x256xf32>, i32 -> vector<8x256xf32>
    %c6 = arith.constant 6 : index
    %c0_48 = arith.constant 0 : index
    %c0_49 = arith.constant 0 : index
    %77 = vector.load %arg2[%c6, %c0_48, %c0_49] : memref<9x8x256xf32, #tpu.memory_space<vmem>>, vector<1x8x256xf32>
    %78 = vector.shape_cast %77 : vector<1x8x256xf32> to vector<8x256xf32>
    %79 = arith.mulf %76, %78 : vector<8x256xf32>
    %c6_50 = arith.constant 6 : index
    %c0_51 = arith.constant 0 : index
    %c0_52 = arith.constant 0 : index
    %80 = vector.load %arg7[%c6_50, %c0_51, %c0_52] : memref<27x8x8xbf16, #tpu.memory_space<vmem>>, vector<1x8x8xbf16>
    %81 = vector.shape_cast %80 : vector<1x8x8xbf16> to vector<8x8xbf16>
    %82 = arith.truncf %79 : vector<8x256xf32> to vector<8x256xbf16>
    %cst_53 = arith.constant dense<0.000000e+00> : vector<8x256xf32>
    %83 = tpu.matmul %81, %82, %cst_53 {dimension_numbers = #tpu.dot_dimension_numbers<[1], [0], [0], [1], [0, 0, 1, 1], [], []>} : vector<8x8xbf16>, vector<8x256xbf16>, vector<8x256xf32> -> vector<8x256xf32>
    %84 = arith.addf %75, %83 : vector<8x256xf32>
    %c240_i32 = arith.constant 240 : i32
    %85 = tpu.dynamic_rotate %13 by %c240_i32 dim 1 : vector<8x256xf32>, i32 -> vector<8x256xf32>
    %c7 = arith.constant 7 : index
    %c0_54 = arith.constant 0 : index
    %c0_55 = arith.constant 0 : index
    %86 = vector.load %arg2[%c7, %c0_54, %c0_55] : memref<9x8x256xf32, #tpu.memory_space<vmem>>, vector<1x8x256xf32>
    %87 = vector.shape_cast %86 : vector<1x8x256xf32> to vector<8x256xf32>
    %88 = arith.mulf %85, %87 : vector<8x256xf32>
    %c7_56 = arith.constant 7 : index
    %c0_57 = arith.constant 0 : index
    %c0_58 = arith.constant 0 : index
    %89 = vector.load %arg7[%c7_56, %c0_57, %c0_58] : memref<27x8x8xbf16, #tpu.memory_space<vmem>>, vector<1x8x8xbf16>
    %90 = vector.shape_cast %89 : vector<1x8x8xbf16> to vector<8x8xbf16>
    %91 = arith.truncf %88 : vector<8x256xf32> to vector<8x256xbf16>
    %cst_59 = arith.constant dense<0.000000e+00> : vector<8x256xf32>
    %92 = tpu.matmul %90, %91, %cst_59 {dimension_numbers = #tpu.dot_dimension_numbers<[1], [0], [0], [1], [0, 0, 1, 1], [], []>} : vector<8x8xbf16>, vector<8x256xbf16>, vector<8x256xf32> -> vector<8x256xf32>
    %93 = arith.addf %84, %92 : vector<8x256xf32>
    %c239_i32 = arith.constant 239 : i32
    %94 = tpu.dynamic_rotate %13 by %c239_i32 dim 1 : vector<8x256xf32>, i32 -> vector<8x256xf32>
    %c8 = arith.constant 8 : index
    %c0_60 = arith.constant 0 : index
    %c0_61 = arith.constant 0 : index
    %95 = vector.load %arg2[%c8, %c0_60, %c0_61] : memref<9x8x256xf32, #tpu.memory_space<vmem>>, vector<1x8x256xf32>
    %96 = vector.shape_cast %95 : vector<1x8x256xf32> to vector<8x256xf32>
    %97 = arith.mulf %94, %96 : vector<8x256xf32>
    %c8_62 = arith.constant 8 : index
    %c0_63 = arith.constant 0 : index
    %c0_64 = arith.constant 0 : index
    %98 = vector.load %arg7[%c8_62, %c0_63, %c0_64] : memref<27x8x8xbf16, #tpu.memory_space<vmem>>, vector<1x8x8xbf16>
    %99 = vector.shape_cast %98 : vector<1x8x8xbf16> to vector<8x8xbf16>
    %100 = arith.truncf %97 : vector<8x256xf32> to vector<8x256xbf16>
    %cst_65 = arith.constant dense<0.000000e+00> : vector<8x256xf32>
    %101 = tpu.matmul %99, %100, %cst_65 {dimension_numbers = #tpu.dot_dimension_numbers<[1], [0], [0], [1], [0, 0, 1, 1], [], []>} : vector<8x8xbf16>, vector<8x256xbf16>, vector<8x256xf32> -> vector<8x256xf32>
    %102 = arith.addf %93, %101 : vector<8x256xf32>
    %c0_66 = arith.constant 0 : index
    %c0_67 = arith.constant 0 : index
    %c0_68 = arith.constant 0 : index
    %103 = vector.load %arg8[%c0_66, %c0_67, %c0_68] : memref<3x8x1xf32, #tpu.memory_space<vmem>>, vector<1x8x1xf32>
    %104 = vector.shape_cast %103 : vector<1x8x1xf32> to vector<8x1xf32>
    %105 = vector.broadcast %104 : vector<8x1xf32> to vector<8x256xf32>
    %106 = arith.addf %102, %105 : vector<8x256xf32>
    %107 = arith.negf %106 : vector<8x256xf32>
    %108 = math.exp %107 : vector<8x256xf32>
    %cst_69 = arith.constant 1.000000e+00 : f32
    %109 = vector.broadcast %cst_69 : f32 to vector<8x256xf32>
    %110 = arith.addf %109, %108 : vector<8x256xf32>
    %111 = arith.divf %109, %110 : vector<8x256xf32>
    %112 = arith.mulf %106, %111 : vector<8x256xf32>
    %cst_70 = arith.constant 0.000000e+00 : f32
    %113 = vector.broadcast %cst_70 : f32 to vector<8x256xf32>
    %c17_i32_71 = arith.constant 17 : i32
    %114 = tpu.dynamic_rotate %112 by %c17_i32_71 dim 1 : vector<8x256xf32>, i32 -> vector<8x256xf32>
    %c0_72 = arith.constant 0 : index
    %c0_73 = arith.constant 0 : index
    %c0_74 = arith.constant 0 : index
    %115 = vector.load %arg2[%c0_72, %c0_73, %c0_74] : memref<9x8x256xf32, #tpu.memory_space<vmem>>, vector<1x8x256xf32>
    %116 = vector.shape_cast %115 : vector<1x8x256xf32> to vector<8x256xf32>
    %117 = arith.mulf %114, %116 : vector<8x256xf32>
    %c9 = arith.constant 9 : index
    %c0_75 = arith.constant 0 : index
    %c0_76 = arith.constant 0 : index
    %118 = vector.load %arg7[%c9, %c0_75, %c0_76] : memref<27x8x8xbf16, #tpu.memory_space<vmem>>, vector<1x8x8xbf16>
    %119 = vector.shape_cast %118 : vector<1x8x8xbf16> to vector<8x8xbf16>
    %120 = arith.truncf %117 : vector<8x256xf32> to vector<8x256xbf16>
    %cst_77 = arith.constant dense<0.000000e+00> : vector<8x256xf32>
    %121 = tpu.matmul %119, %120, %cst_77 {dimension_numbers = #tpu.dot_dimension_numbers<[1], [0], [0], [1], [0, 0, 1, 1], [], []>} : vector<8x8xbf16>, vector<8x256xbf16>, vector<8x256xf32> -> vector<8x256xf32>
    %122 = arith.addf %113, %121 : vector<8x256xf32>
    %c16_i32_78 = arith.constant 16 : i32
    %123 = tpu.dynamic_rotate %112 by %c16_i32_78 dim 1 : vector<8x256xf32>, i32 -> vector<8x256xf32>
    %c1_79 = arith.constant 1 : index
    %c0_80 = arith.constant 0 : index
    %c0_81 = arith.constant 0 : index
    %124 = vector.load %arg2[%c1_79, %c0_80, %c0_81] : memref<9x8x256xf32, #tpu.memory_space<vmem>>, vector<1x8x256xf32>
    %125 = vector.shape_cast %124 : vector<1x8x256xf32> to vector<8x256xf32>
    %126 = arith.mulf %123, %125 : vector<8x256xf32>
    %c10 = arith.constant 10 : index
    %c0_82 = arith.constant 0 : index
    %c0_83 = arith.constant 0 : index
    %127 = vector.load %arg7[%c10, %c0_82, %c0_83] : memref<27x8x8xbf16, #tpu.memory_space<vmem>>, vector<1x8x8xbf16>
    %128 = vector.shape_cast %127 : vector<1x8x8xbf16> to vector<8x8xbf16>
    %129 = arith.truncf %126 : vector<8x256xf32> to vector<8x256xbf16>
    %cst_84 = arith.constant dense<0.000000e+00> : vector<8x256xf32>
    %130 = tpu.matmul %128, %129, %cst_84 {dimension_numbers = #tpu.dot_dimension_numbers<[1], [0], [0], [1], [0, 0, 1, 1], [], []>} : vector<8x8xbf16>, vector<8x256xbf16>, vector<8x256xf32> -> vector<8x256xf32>
    %131 = arith.addf %122, %130 : vector<8x256xf32>
    %c15_i32_85 = arith.constant 15 : i32
    %132 = tpu.dynamic_rotate %112 by %c15_i32_85 dim 1 : vector<8x256xf32>, i32 -> vector<8x256xf32>
    %c2_86 = arith.constant 2 : index
    %c0_87 = arith.constant 0 : index
    %c0_88 = arith.constant 0 : index
    %133 = vector.load %arg2[%c2_86, %c0_87, %c0_88] : memref<9x8x256xf32, #tpu.memory_space<vmem>>, vector<1x8x256xf32>
    %134 = vector.shape_cast %133 : vector<1x8x256xf32> to vector<8x256xf32>
    %135 = arith.mulf %132, %134 : vector<8x256xf32>
    %c11 = arith.constant 11 : index
    %c0_89 = arith.constant 0 : index
    %c0_90 = arith.constant 0 : index
    %136 = vector.load %arg7[%c11, %c0_89, %c0_90] : memref<27x8x8xbf16, #tpu.memory_space<vmem>>, vector<1x8x8xbf16>
    %137 = vector.shape_cast %136 : vector<1x8x8xbf16> to vector<8x8xbf16>
    %138 = arith.truncf %135 : vector<8x256xf32> to vector<8x256xbf16>
    %cst_91 = arith.constant dense<0.000000e+00> : vector<8x256xf32>
    %139 = tpu.matmul %137, %138, %cst_91 {dimension_numbers = #tpu.dot_dimension_numbers<[1], [0], [0], [1], [0, 0, 1, 1], [], []>} : vector<8x8xbf16>, vector<8x256xbf16>, vector<8x256xf32> -> vector<8x256xf32>
    %140 = arith.addf %131, %139 : vector<8x256xf32>
    %c1_i32_92 = arith.constant 1 : i32
    %141 = tpu.dynamic_rotate %112 by %c1_i32_92 dim 1 : vector<8x256xf32>, i32 -> vector<8x256xf32>
    %c3_93 = arith.constant 3 : index
    %c0_94 = arith.constant 0 : index
    %c0_95 = arith.constant 0 : index
    %142 = vector.load %arg2[%c3_93, %c0_94, %c0_95] : memref<9x8x256xf32, #tpu.memory_space<vmem>>, vector<1x8x256xf32>
    %143 = vector.shape_cast %142 : vector<1x8x256xf32> to vector<8x256xf32>
    %144 = arith.mulf %141, %143 : vector<8x256xf32>
    %c12 = arith.constant 12 : index
    %c0_96 = arith.constant 0 : index
    %c0_97 = arith.constant 0 : index
    %145 = vector.load %arg7[%c12, %c0_96, %c0_97] : memref<27x8x8xbf16, #tpu.memory_space<vmem>>, vector<1x8x8xbf16>
    %146 = vector.shape_cast %145 : vector<1x8x8xbf16> to vector<8x8xbf16>
    %147 = arith.truncf %144 : vector<8x256xf32> to vector<8x256xbf16>
    %cst_98 = arith.constant dense<0.000000e+00> : vector<8x256xf32>
    %148 = tpu.matmul %146, %147, %cst_98 {dimension_numbers = #tpu.dot_dimension_numbers<[1], [0], [0], [1], [0, 0, 1, 1], [], []>} : vector<8x8xbf16>, vector<8x256xbf16>, vector<8x256xf32> -> vector<8x256xf32>
    %149 = arith.addf %140, %148 : vector<8x256xf32>
    %c13 = arith.constant 13 : index
    %c0_99 = arith.constant 0 : index
    %c0_100 = arith.constant 0 : index
    %150 = vector.load %arg7[%c13, %c0_99, %c0_100] : memref<27x8x8xbf16, #tpu.memory_space<vmem>>, vector<1x8x8xbf16>
    %151 = vector.shape_cast %150 : vector<1x8x8xbf16> to vector<8x8xbf16>
    %152 = arith.truncf %112 : vector<8x256xf32> to vector<8x256xbf16>
    %cst_101 = arith.constant dense<0.000000e+00> : vector<8x256xf32>
    %153 = tpu.matmul %151, %152, %cst_101 {dimension_numbers = #tpu.dot_dimension_numbers<[1], [0], [0], [1], [0, 0, 1, 1], [], []>} : vector<8x8xbf16>, vector<8x256xbf16>, vector<8x256xf32> -> vector<8x256xf32>
    %154 = arith.addf %149, %153 : vector<8x256xf32>
    %c255_i32_102 = arith.constant 255 : i32
    %155 = tpu.dynamic_rotate %112 by %c255_i32_102 dim 1 : vector<8x256xf32>, i32 -> vector<8x256xf32>
    %c5_103 = arith.constant 5 : index
    %c0_104 = arith.constant 0 : index
    %c0_105 = arith.constant 0 : index
    %156 = vector.load %arg2[%c5_103, %c0_104, %c0_105] : memref<9x8x256xf32, #tpu.memory_space<vmem>>, vector<1x8x256xf32>
    %157 = vector.shape_cast %156 : vector<1x8x256xf32> to vector<8x256xf32>
    %158 = arith.mulf %155, %157 : vector<8x256xf32>
    %c14 = arith.constant 14 : index
    %c0_106 = arith.constant 0 : index
    %c0_107 = arith.constant 0 : index
    %159 = vector.load %arg7[%c14, %c0_106, %c0_107] : memref<27x8x8xbf16, #tpu.memory_space<vmem>>, vector<1x8x8xbf16>
    %160 = vector.shape_cast %159 : vector<1x8x8xbf16> to vector<8x8xbf16>
    %161 = arith.truncf %158 : vector<8x256xf32> to vector<8x256xbf16>
    %cst_108 = arith.constant dense<0.000000e+00> : vector<8x256xf32>
    %162 = tpu.matmul %160, %161, %cst_108 {dimension_numbers = #tpu.dot_dimension_numbers<[1], [0], [0], [1], [0, 0, 1, 1], [], []>} : vector<8x8xbf16>, vector<8x256xbf16>, vector<8x256xf32> -> vector<8x256xf32>
    %163 = arith.addf %154, %162 : vector<8x256xf32>
    %c241_i32_109 = arith.constant 241 : i32
    %164 = tpu.dynamic_rotate %112 by %c241_i32_109 dim 1 : vector<8x256xf32>, i32 -> vector<8x256xf32>
    %c6_110 = arith.constant 6 : index
    %c0_111 = arith.constant 0 : index
    %c0_112 = arith.constant 0 : index
    %165 = vector.load %arg2[%c6_110, %c0_111, %c0_112] : memref<9x8x256xf32, #tpu.memory_space<vmem>>, vector<1x8x256xf32>
    %166 = vector.shape_cast %165 : vector<1x8x256xf32> to vector<8x256xf32>
    %167 = arith.mulf %164, %166 : vector<8x256xf32>
    %c15 = arith.constant 15 : index
    %c0_113 = arith.constant 0 : index
    %c0_114 = arith.constant 0 : index
    %168 = vector.load %arg7[%c15, %c0_113, %c0_114] : memref<27x8x8xbf16, #tpu.memory_space<vmem>>, vector<1x8x8xbf16>
    %169 = vector.shape_cast %168 : vector<1x8x8xbf16> to vector<8x8xbf16>
    %170 = arith.truncf %167 : vector<8x256xf32> to vector<8x256xbf16>
    %cst_115 = arith.constant dense<0.000000e+00> : vector<8x256xf32>
    %171 = tpu.matmul %169, %170, %cst_115 {dimension_numbers = #tpu.dot_dimension_numbers<[1], [0], [0], [1], [0, 0, 1, 1], [], []>} : vector<8x8xbf16>, vector<8x256xbf16>, vector<8x256xf32> -> vector<8x256xf32>
    %172 = arith.addf %163, %171 : vector<8x256xf32>
    %c240_i32_116 = arith.constant 240 : i32
    %173 = tpu.dynamic_rotate %112 by %c240_i32_116 dim 1 : vector<8x256xf32>, i32 -> vector<8x256xf32>
    %c7_117 = arith.constant 7 : index
    %c0_118 = arith.constant 0 : index
    %c0_119 = arith.constant 0 : index
    %174 = vector.load %arg2[%c7_117, %c0_118, %c0_119] : memref<9x8x256xf32, #tpu.memory_space<vmem>>, vector<1x8x256xf32>
    %175 = vector.shape_cast %174 : vector<1x8x256xf32> to vector<8x256xf32>
    %176 = arith.mulf %173, %175 : vector<8x256xf32>
    %c16 = arith.constant 16 : index
    %c0_120 = arith.constant 0 : index
    %c0_121 = arith.constant 0 : index
    %177 = vector.load %arg7[%c16, %c0_120, %c0_121] : memref<27x8x8xbf16, #tpu.memory_space<vmem>>, vector<1x8x8xbf16>
    %178 = vector.shape_cast %177 : vector<1x8x8xbf16> to vector<8x8xbf16>
    %179 = arith.truncf %176 : vector<8x256xf32> to vector<8x256xbf16>
    %cst_122 = arith.constant dense<0.000000e+00> : vector<8x256xf32>
    %180 = tpu.matmul %178, %179, %cst_122 {dimension_numbers = #tpu.dot_dimension_numbers<[1], [0], [0], [1], [0, 0, 1, 1], [], []>} : vector<8x8xbf16>, vector<8x256xbf16>, vector<8x256xf32> -> vector<8x256xf32>
    %181 = arith.addf %172, %180 : vector<8x256xf32>
    %c239_i32_123 = arith.constant 239 : i32
    %182 = tpu.dynamic_rotate %112 by %c239_i32_123 dim 1 : vector<8x256xf32>, i32 -> vector<8x256xf32>
    %c8_124 = arith.constant 8 : index
    %c0_125 = arith.constant 0 : index
    %c0_126 = arith.constant 0 : index
    %183 = vector.load %arg2[%c8_124, %c0_125, %c0_126] : memref<9x8x256xf32, #tpu.memory_space<vmem>>, vector<1x8x256xf32>
    %184 = vector.shape_cast %183 : vector<1x8x256xf32> to vector<8x256xf32>
    %185 = arith.mulf %182, %184 : vector<8x256xf32>
    %c17 = arith.constant 17 : index
    %c0_127 = arith.constant 0 : index
    %c0_128 = arith.constant 0 : index
    %186 = vector.load %arg7[%c17, %c0_127, %c0_128] : memref<27x8x8xbf16, #tpu.memory_space<vmem>>, vector<1x8x8xbf16>
    %187 = vector.shape_cast %186 : vector<1x8x8xbf16> to vector<8x8xbf16>
    %188 = arith.truncf %185 : vector<8x256xf32> to vector<8x256xbf16>
    %cst_129 = arith.constant dense<0.000000e+00> : vector<8x256xf32>
    %189 = tpu.matmul %187, %188, %cst_129 {dimension_numbers = #tpu.dot_dimension_numbers<[1], [0], [0], [1], [0, 0, 1, 1], [], []>} : vector<8x8xbf16>, vector<8x256xbf16>, vector<8x256xf32> -> vector<8x256xf32>
    %190 = arith.addf %181, %189 : vector<8x256xf32>
    %c1_130 = arith.constant 1 : index
    %c0_131 = arith.constant 0 : index
    %c0_132 = arith.constant 0 : index
    %191 = vector.load %arg8[%c1_130, %c0_131, %c0_132] : memref<3x8x1xf32, #tpu.memory_space<vmem>>, vector<1x8x1xf32>
    %192 = vector.shape_cast %191 : vector<1x8x1xf32> to vector<8x1xf32>
    %193 = vector.broadcast %192 : vector<8x1xf32> to vector<8x256xf32>
    %194 = arith.addf %190, %193 : vector<8x256xf32>
    %195 = arith.negf %194 : vector<8x256xf32>
    %196 = math.exp %195 : vector<8x256xf32>
    %cst_133 = arith.constant 1.000000e+00 : f32
    %197 = vector.broadcast %cst_133 : f32 to vector<8x256xf32>
    %198 = arith.addf %197, %196 : vector<8x256xf32>
    %199 = arith.divf %197, %198 : vector<8x256xf32>
    %200 = arith.mulf %194, %199 : vector<8x256xf32>
    %cst_134 = arith.constant 0.000000e+00 : f32
    %201 = vector.broadcast %cst_134 : f32 to vector<8x256xf32>
    %c17_i32_135 = arith.constant 17 : i32
    %202 = tpu.dynamic_rotate %200 by %c17_i32_135 dim 1 : vector<8x256xf32>, i32 -> vector<8x256xf32>
    %c0_136 = arith.constant 0 : index
    %c0_137 = arith.constant 0 : index
    %c0_138 = arith.constant 0 : index
    %203 = vector.load %arg2[%c0_136, %c0_137, %c0_138] : memref<9x8x256xf32, #tpu.memory_space<vmem>>, vector<1x8x256xf32>
    %204 = vector.shape_cast %203 : vector<1x8x256xf32> to vector<8x256xf32>
    %205 = arith.mulf %202, %204 : vector<8x256xf32>
    %c18 = arith.constant 18 : index
    %c0_139 = arith.constant 0 : index
    %c0_140 = arith.constant 0 : index
    %206 = vector.load %arg7[%c18, %c0_139, %c0_140] : memref<27x8x8xbf16, #tpu.memory_space<vmem>>, vector<1x8x8xbf16>
    %207 = vector.shape_cast %206 : vector<1x8x8xbf16> to vector<8x8xbf16>
    %208 = arith.truncf %205 : vector<8x256xf32> to vector<8x256xbf16>
    %cst_141 = arith.constant dense<0.000000e+00> : vector<8x256xf32>
    %209 = tpu.matmul %207, %208, %cst_141 {dimension_numbers = #tpu.dot_dimension_numbers<[1], [0], [0], [1], [0, 0, 1, 1], [], []>} : vector<8x8xbf16>, vector<8x256xbf16>, vector<8x256xf32> -> vector<8x256xf32>
    %210 = arith.addf %201, %209 : vector<8x256xf32>
    %c16_i32_142 = arith.constant 16 : i32
    %211 = tpu.dynamic_rotate %200 by %c16_i32_142 dim 1 : vector<8x256xf32>, i32 -> vector<8x256xf32>
    %c1_143 = arith.constant 1 : index
    %c0_144 = arith.constant 0 : index
    %c0_145 = arith.constant 0 : index
    %212 = vector.load %arg2[%c1_143, %c0_144, %c0_145] : memref<9x8x256xf32, #tpu.memory_space<vmem>>, vector<1x8x256xf32>
    %213 = vector.shape_cast %212 : vector<1x8x256xf32> to vector<8x256xf32>
    %214 = arith.mulf %211, %213 : vector<8x256xf32>
    %c19 = arith.constant 19 : index
    %c0_146 = arith.constant 0 : index
    %c0_147 = arith.constant 0 : index
    %215 = vector.load %arg7[%c19, %c0_146, %c0_147] : memref<27x8x8xbf16, #tpu.memory_space<vmem>>, vector<1x8x8xbf16>
    %216 = vector.shape_cast %215 : vector<1x8x8xbf16> to vector<8x8xbf16>
    %217 = arith.truncf %214 : vector<8x256xf32> to vector<8x256xbf16>
    %cst_148 = arith.constant dense<0.000000e+00> : vector<8x256xf32>
    %218 = tpu.matmul %216, %217, %cst_148 {dimension_numbers = #tpu.dot_dimension_numbers<[1], [0], [0], [1], [0, 0, 1, 1], [], []>} : vector<8x8xbf16>, vector<8x256xbf16>, vector<8x256xf32> -> vector<8x256xf32>
    %219 = arith.addf %210, %218 : vector<8x256xf32>
    %c15_i32_149 = arith.constant 15 : i32
    %220 = tpu.dynamic_rotate %200 by %c15_i32_149 dim 1 : vector<8x256xf32>, i32 -> vector<8x256xf32>
    %c2_150 = arith.constant 2 : index
    %c0_151 = arith.constant 0 : index
    %c0_152 = arith.constant 0 : index
    %221 = vector.load %arg2[%c2_150, %c0_151, %c0_152] : memref<9x8x256xf32, #tpu.memory_space<vmem>>, vector<1x8x256xf32>
    %222 = vector.shape_cast %221 : vector<1x8x256xf32> to vector<8x256xf32>
    %223 = arith.mulf %220, %222 : vector<8x256xf32>
    %c20 = arith.constant 20 : index
    %c0_153 = arith.constant 0 : index
    %c0_154 = arith.constant 0 : index
    %224 = vector.load %arg7[%c20, %c0_153, %c0_154] : memref<27x8x8xbf16, #tpu.memory_space<vmem>>, vector<1x8x8xbf16>
    %225 = vector.shape_cast %224 : vector<1x8x8xbf16> to vector<8x8xbf16>
    %226 = arith.truncf %223 : vector<8x256xf32> to vector<8x256xbf16>
    %cst_155 = arith.constant dense<0.000000e+00> : vector<8x256xf32>
    %227 = tpu.matmul %225, %226, %cst_155 {dimension_numbers = #tpu.dot_dimension_numbers<[1], [0], [0], [1], [0, 0, 1, 1], [], []>} : vector<8x8xbf16>, vector<8x256xbf16>, vector<8x256xf32> -> vector<8x256xf32>
    %228 = arith.addf %219, %227 : vector<8x256xf32>
    %c1_i32_156 = arith.constant 1 : i32
    %229 = tpu.dynamic_rotate %200 by %c1_i32_156 dim 1 : vector<8x256xf32>, i32 -> vector<8x256xf32>
    %c3_157 = arith.constant 3 : index
    %c0_158 = arith.constant 0 : index
    %c0_159 = arith.constant 0 : index
    %230 = vector.load %arg2[%c3_157, %c0_158, %c0_159] : memref<9x8x256xf32, #tpu.memory_space<vmem>>, vector<1x8x256xf32>
    %231 = vector.shape_cast %230 : vector<1x8x256xf32> to vector<8x256xf32>
    %232 = arith.mulf %229, %231 : vector<8x256xf32>
    %c21 = arith.constant 21 : index
    %c0_160 = arith.constant 0 : index
    %c0_161 = arith.constant 0 : index
    %233 = vector.load %arg7[%c21, %c0_160, %c0_161] : memref<27x8x8xbf16, #tpu.memory_space<vmem>>, vector<1x8x8xbf16>
    %234 = vector.shape_cast %233 : vector<1x8x8xbf16> to vector<8x8xbf16>
    %235 = arith.truncf %232 : vector<8x256xf32> to vector<8x256xbf16>
    %cst_162 = arith.constant dense<0.000000e+00> : vector<8x256xf32>
    %236 = tpu.matmul %234, %235, %cst_162 {dimension_numbers = #tpu.dot_dimension_numbers<[1], [0], [0], [1], [0, 0, 1, 1], [], []>} : vector<8x8xbf16>, vector<8x256xbf16>, vector<8x256xf32> -> vector<8x256xf32>
    %237 = arith.addf %228, %236 : vector<8x256xf32>
    %c22 = arith.constant 22 : index
    %c0_163 = arith.constant 0 : index
    %c0_164 = arith.constant 0 : index
    %238 = vector.load %arg7[%c22, %c0_163, %c0_164] : memref<27x8x8xbf16, #tpu.memory_space<vmem>>, vector<1x8x8xbf16>
    %239 = vector.shape_cast %238 : vector<1x8x8xbf16> to vector<8x8xbf16>
    %240 = arith.truncf %200 : vector<8x256xf32> to vector<8x256xbf16>
    %cst_165 = arith.constant dense<0.000000e+00> : vector<8x256xf32>
    %241 = tpu.matmul %239, %240, %cst_165 {dimension_numbers = #tpu.dot_dimension_numbers<[1], [0], [0], [1], [0, 0, 1, 1], [], []>} : vector<8x8xbf16>, vector<8x256xbf16>, vector<8x256xf32> -> vector<8x256xf32>
    %242 = arith.addf %237, %241 : vector<8x256xf32>
    %c255_i32_166 = arith.constant 255 : i32
    %243 = tpu.dynamic_rotate %200 by %c255_i32_166 dim 1 : vector<8x256xf32>, i32 -> vector<8x256xf32>
    %c5_167 = arith.constant 5 : index
    %c0_168 = arith.constant 0 : index
    %c0_169 = arith.constant 0 : index
    %244 = vector.load %arg2[%c5_167, %c0_168, %c0_169] : memref<9x8x256xf32, #tpu.memory_space<vmem>>, vector<1x8x256xf32>
    %245 = vector.shape_cast %244 : vector<1x8x256xf32> to vector<8x256xf32>
    %246 = arith.mulf %243, %245 : vector<8x256xf32>
    %c23 = arith.constant 23 : index
    %c0_170 = arith.constant 0 : index
    %c0_171 = arith.constant 0 : index
    %247 = vector.load %arg7[%c23, %c0_170, %c0_171] : memref<27x8x8xbf16, #tpu.memory_space<vmem>>, vector<1x8x8xbf16>
    %248 = vector.shape_cast %247 : vector<1x8x8xbf16> to vector<8x8xbf16>
    %249 = arith.truncf %246 : vector<8x256xf32> to vector<8x256xbf16>
    %cst_172 = arith.constant dense<0.000000e+00> : vector<8x256xf32>
    %250 = tpu.matmul %248, %249, %cst_172 {dimension_numbers = #tpu.dot_dimension_numbers<[1], [0], [0], [1], [0, 0, 1, 1], [], []>} : vector<8x8xbf16>, vector<8x256xbf16>, vector<8x256xf32> -> vector<8x256xf32>
    %251 = arith.addf %242, %250 : vector<8x256xf32>
    %c241_i32_173 = arith.constant 241 : i32
    %252 = tpu.dynamic_rotate %200 by %c241_i32_173 dim 1 : vector<8x256xf32>, i32 -> vector<8x256xf32>
    %c6_174 = arith.constant 6 : index
    %c0_175 = arith.constant 0 : index
    %c0_176 = arith.constant 0 : index
    %253 = vector.load %arg2[%c6_174, %c0_175, %c0_176] : memref<9x8x256xf32, #tpu.memory_space<vmem>>, vector<1x8x256xf32>
    %254 = vector.shape_cast %253 : vector<1x8x256xf32> to vector<8x256xf32>
    %255 = arith.mulf %252, %254 : vector<8x256xf32>
    %c24 = arith.constant 24 : index
    %c0_177 = arith.constant 0 : index
    %c0_178 = arith.constant 0 : index
    %256 = vector.load %arg7[%c24, %c0_177, %c0_178] : memref<27x8x8xbf16, #tpu.memory_space<vmem>>, vector<1x8x8xbf16>
    %257 = vector.shape_cast %256 : vector<1x8x8xbf16> to vector<8x8xbf16>
    %258 = arith.truncf %255 : vector<8x256xf32> to vector<8x256xbf16>
    %cst_179 = arith.constant dense<0.000000e+00> : vector<8x256xf32>
    %259 = tpu.matmul %257, %258, %cst_179 {dimension_numbers = #tpu.dot_dimension_numbers<[1], [0], [0], [1], [0, 0, 1, 1], [], []>} : vector<8x8xbf16>, vector<8x256xbf16>, vector<8x256xf32> -> vector<8x256xf32>
    %260 = arith.addf %251, %259 : vector<8x256xf32>
    %c240_i32_180 = arith.constant 240 : i32
    %261 = tpu.dynamic_rotate %200 by %c240_i32_180 dim 1 : vector<8x256xf32>, i32 -> vector<8x256xf32>
    %c7_181 = arith.constant 7 : index
    %c0_182 = arith.constant 0 : index
    %c0_183 = arith.constant 0 : index
    %262 = vector.load %arg2[%c7_181, %c0_182, %c0_183] : memref<9x8x256xf32, #tpu.memory_space<vmem>>, vector<1x8x256xf32>
    %263 = vector.shape_cast %262 : vector<1x8x256xf32> to vector<8x256xf32>
    %264 = arith.mulf %261, %263 : vector<8x256xf32>
    %c25 = arith.constant 25 : index
    %c0_184 = arith.constant 0 : index
    %c0_185 = arith.constant 0 : index
    %265 = vector.load %arg7[%c25, %c0_184, %c0_185] : memref<27x8x8xbf16, #tpu.memory_space<vmem>>, vector<1x8x8xbf16>
    %266 = vector.shape_cast %265 : vector<1x8x8xbf16> to vector<8x8xbf16>
    %267 = arith.truncf %264 : vector<8x256xf32> to vector<8x256xbf16>
    %cst_186 = arith.constant dense<0.000000e+00> : vector<8x256xf32>
    %268 = tpu.matmul %266, %267, %cst_186 {dimension_numbers = #tpu.dot_dimension_numbers<[1], [0], [0], [1], [0, 0, 1, 1], [], []>} : vector<8x8xbf16>, vector<8x256xbf16>, vector<8x256xf32> -> vector<8x256xf32>
    %269 = arith.addf %260, %268 : vector<8x256xf32>
    %c239_i32_187 = arith.constant 239 : i32
    %270 = tpu.dynamic_rotate %200 by %c239_i32_187 dim 1 : vector<8x256xf32>, i32 -> vector<8x256xf32>
    %c8_188 = arith.constant 8 : index
    %c0_189 = arith.constant 0 : index
    %c0_190 = arith.constant 0 : index
    %271 = vector.load %arg2[%c8_188, %c0_189, %c0_190] : memref<9x8x256xf32, #tpu.memory_space<vmem>>, vector<1x8x256xf32>
    %272 = vector.shape_cast %271 : vector<1x8x256xf32> to vector<8x256xf32>
    %273 = arith.mulf %270, %272 : vector<8x256xf32>
    %c26 = arith.constant 26 : index
    %c0_191 = arith.constant 0 : index
    %c0_192 = arith.constant 0 : index
    %274 = vector.load %arg7[%c26, %c0_191, %c0_192] : memref<27x8x8xbf16, #tpu.memory_space<vmem>>, vector<1x8x8xbf16>
    %275 = vector.shape_cast %274 : vector<1x8x8xbf16> to vector<8x8xbf16>
    %276 = arith.truncf %273 : vector<8x256xf32> to vector<8x256xbf16>
    %cst_193 = arith.constant dense<0.000000e+00> : vector<8x256xf32>
    %277 = tpu.matmul %275, %276, %cst_193 {dimension_numbers = #tpu.dot_dimension_numbers<[1], [0], [0], [1], [0, 0, 1, 1], [], []>} : vector<8x8xbf16>, vector<8x256xbf16>, vector<8x256xf32> -> vector<8x256xf32>
    %278 = arith.addf %269, %277 : vector<8x256xf32>
    %c2_194 = arith.constant 2 : index
    %c0_195 = arith.constant 0 : index
    %c0_196 = arith.constant 0 : index
    %279 = vector.load %arg8[%c2_194, %c0_195, %c0_196] : memref<3x8x1xf32, #tpu.memory_space<vmem>>, vector<1x8x1xf32>
    %280 = vector.shape_cast %279 : vector<1x8x1xf32> to vector<8x1xf32>
    %281 = vector.broadcast %280 : vector<8x1xf32> to vector<8x256xf32>
    %282 = arith.addf %278, %281 : vector<8x256xf32>
    %283 = arith.negf %282 : vector<8x256xf32>
    %284 = math.exp %283 : vector<8x256xf32>
    %cst_197 = arith.constant 1.000000e+00 : f32
    %285 = vector.broadcast %cst_197 : f32 to vector<8x256xf32>
    %286 = arith.addf %285, %284 : vector<8x256xf32>
    %287 = arith.divf %285, %286 : vector<8x256xf32>
    %288 = arith.mulf %282, %287 : vector<8x256xf32>
    %289 = arith.addf %288, %24 : vector<8x256xf32>
    %c0_198 = arith.constant 0 : index
    %c0_199 = arith.constant 0 : index
    %c0_200 = arith.constant 0 : index
    %290 = vector.load %arg9[%c0_198, %c0_199, %c0_200] : memref<1x8x256xf32, #tpu.memory_space<vmem>>, vector<1x8x256xf32>
    %291 = vector.shape_cast %290 : vector<1x8x256xf32> to vector<8x256xf32>
    %292 = vector.shape_cast %289 : vector<8x256xf32> to vector<1x8x256xf32>
    tpu.vector_store %arg9[%c0_198, %c0_199, %c0_200], %292 {strides = array<i32>} : memref<1x8x256xf32, #tpu.memory_space<vmem>>, vector<1x8x256xf32>,
    return
  }
  func.func @transform_0(%arg0: i32) -> (i32, i32, i32) {
    %c0_i32 = arith.constant 0 : i32
    %c0_i32_0 = arith.constant 0 : i32
    %c0_i32_1 = arith.constant 0 : i32
    return %arg0, %c0_i32, %c0_i32_0 : i32, i32, i32
  }
  func.func @transform_1(%arg0: i32) -> (i32, i32, i32) {
    %c0_i32 = arith.constant 0 : i32
    %c0_i32_0 = arith.constant 0 : i32
    %c0_i32_1 = arith.constant 0 : i32
    %c0_i32_2 = arith.constant 0 : i32
    return %c0_i32, %c0_i32_0, %c0_i32_1 : i32, i32, i32
  }
  func.func @transform_2(%arg0: i32) -> (i32, i32) {
    %c0_i32 = arith.constant 0 : i32
    %c0_i32_0 = arith.constant 0 : i32
    %c0_i32_1 = arith.constant 0 : i32
    return %c0_i32, %c0_i32_0 : i32, i32
  }
  func.func @transform_3(%arg0: i32) -> (i32, i32) {
    %c0_i32 = arith.constant 0 : i32
    %c0_i32_0 = arith.constant 0 : i32
    %c0_i32_1 = arith.constant 0 : i32
    return %c0_i32, %c0_i32_0 : i32, i32
  }
  func.func @transform_4(%arg0: i32) -> (i32, i32) {
    %c0_i32 = arith.constant 0 : i32
    %c0_i32_0 = arith.constant 0 : i32
    %c0_i32_1 = arith.constant 0 : i32
    return %c0_i32, %c0_i32_0 : i32, i32
  }
  func.func @transform_5(%arg0: i32) -> (i32, i32) {
    %c0_i32 = arith.constant 0 : i32
    %c0_i32_0 = arith.constant 0 : i32
    %c0_i32_1 = arith.constant 0 : i32
    return %c0_i32, %c0_i32_0 : i32, i32
  }
  func.func @transform_6(%arg0: i32) -> (i32, i32, i32) {
    %c0_i32 = arith.constant 0 : i32
    %c0_i32_0 = arith.constant 0 : i32
    %c0_i32_1 = arith.constant 0 : i32
    %c0_i32_2 = arith.constant 0 : i32
    return %c0_i32, %c0_i32_0, %c0_i32_1 : i32, i32, i32
  }
  func.func @transform_7(%arg0: i32) -> (i32, i32, i32) {
    %c0_i32 = arith.constant 0 : i32
    %c0_i32_0 = arith.constant 0 : i32
    %c0_i32_1 = arith.constant 0 : i32
    %c0_i32_2 = arith.constant 0 : i32
    return %c0_i32, %c0_i32_0, %c0_i32_1 : i32, i32, i32
  }
  func.func @transform_8(%arg0: i32) -> (i32, i32, i32) {
    %c0_i32 = arith.constant 0 : i32
    %c0_i32_0 = arith.constant 0 : i32
    %c0_i32_1 = arith.constant 0 : i32
    return %arg0, %c0_i32, %c0_i32_0 : i32, i32, i32
  }
}

</mosaic_0001>

<llo_original>
// kernel: repc3_forward.1
$region0: #{repc3_forward.1}
  #allocation0 [shape = 'u32[]', space=smem, size = 0x4, offset = 0x4, fixed_abs, tag = 'smem constant byte address 0x4 - core index']
  #allocation1 [shape = 'u32[144,128]{1,0:T(1,128)}', space=vmem, size = 0x12000, scoped, tag = 'internal scratch']
  %s0 = inlined_call_operand.vmem [shape: f32[2,4,256], index: 0, kind: input, shape index: {}]
  %s1 = inlined_call_operand.vmem [shape: f32[9,8,256], index: 1, kind: input, shape index: {}]
  %s2 = inlined_call_operand.vmem [shape: bf16[8,4], index: 2, kind: input, shape index: {}]
  %s3 = inlined_call_operand.vmem [shape: f32[8,1], index: 3, kind: input, shape index: {}]
  %s4 = inlined_call_operand.vmem [shape: bf16[8,4], index: 4, kind: input, shape index: {}]
  %s5 = inlined_call_operand.vmem [shape: f32[8,1], index: 5, kind: input, shape index: {}]
  %s6 = inlined_call_operand.vmem [shape: bf16[27,8,8], index: 6, kind: input, shape index: {}]
  %s7 = inlined_call_operand.vmem [shape: f32[3,8,1], index: 7, kind: input, shape index: {}]
  %s8 = inlined_call_operand.vmem [shape: f32[2,8,256], index: 8, kind: output, shape index: {}]
  %s9 = sld [smem:[#allocation0]]
  $region65: #{repc3_forward.1} parent=0
    _
  %s11 = ssub.s32 1, %s9
  %s12 = scalar_select 0, %s11, %s9
  loop: start=0, step=1, limit=4
  $region2: #{repc3_forward.1} parent=0 // loop_pre_header
    _
  $region3: #{repc3_forward.1} parent=0 // loop_header
    %s14 = sphi 0, %s18
    %p15 = scmp.ge.s32.totalorder %s14, 4
    %s24 = sphi 0, %s26
    %s27 = sphi 0, %s24
    %s28 = sphi 0, %s27
    %s44 = sphi 0, %s28
    %s48 = sphi 0, %s48
    %s50 = sphi 0, %s48
    %s51 = sphi 0, %s50
    %s65 = sphi 0, %s51
    %s69 = sphi 0, %s69
    %s71 = sphi 0, %s69
    %s72 = sphi 0, %s71
    %s86 = sphi 0, %s72
    %s90 = sphi 0, %s90
    %s92 = sphi 0, %s90
    %s93 = sphi 0, %s92
    %s107 = sphi 0, %s93
    %s111 = sphi 0, %s111
    %s113 = sphi 0, %s111
    %s114 = sphi 0, %s113
    %s128 = sphi 0, %s114
    %s132 = sphi 0, %s132
    %s134 = sphi 0, %s132
    %s135 = sphi 0, %s134
    %s149 = sphi 0, %s135
    %s153 = sphi 0, %s153
    %s155 = sphi 0, %s153
    %s156 = sphi 0, %s155
    %s170 = sphi 0, %s156
    %s174 = sphi 0, %s174
    %s176 = sphi 0, %s174
    %s177 = sphi 0, %s176
    %s191 = sphi 0, %s177
    %s197 = sphi 0, %s199
    %s200 = sphi 0, %s197
    %s201 = sphi 0, %s200
    %s217 = sphi 0, %s201
  $region4: #{repc3_forward.1} parent=0 // loop_header_branch
    %17 = sbr.rel (%p15) target = $region8
  $region5: #{repc3_forward.1} parent=0 // loop_body
    %s19 = ssub.s32 %s14, 1
    %s20 = ssub.s32 %s14, 2
    %s21 = sadd.s32 %s14, 1
    %s22 = ssub.s32 %s14, %s21
    %p23 = scmp.eq.s32.totalorder %s22, 0
    %s25 = sadd.s32 %s24, 1
    %s26 = scalar_select %p23, %s24, %s25
    %p29 = pneg %p23
    %p30 = scmp.eq.s32.totalorder %s14, 1
    %p31 = por %p29, %p30
    %p32 = scmp.ne.s32.totalorder %s24, %s27
    %p33 = scmp.eq.s32.totalorder %s14, 0
    %p34 = por %p32, %p33
    %p35 = scmp.ne.s32.totalorder %s24, %s27
    %p36 = scmp.eq.s32.totalorder %s19, 1
    %p37 = por %p35, %p36
    %p38 = scmp.ne.s32.totalorder %s27, %s28
    %p39 = scmp.eq.s32.totalorder %s19, 0
    %p40 = por %p38, %p39
    %p41 = scmp.ne.s32.totalorder %s27, %s28
    %p42 = scmp.eq.s32.totalorder %s20, 1
    %p43 = por %p41, %p42
    %p45 = scmp.ne.s32.totalorder %s28, %s44
    %p46 = scmp.eq.s32.totalorder %s20, 0
    %p47 = por %p45, %p46
    %s49 = sadd.s32 %s48, 1
    %p52 = scmp.eq.s32.totalorder %s14, 1
    %p53 = scmp.ne.s32.totalorder %s48, %s50
    %p54 = scmp.eq.s32.totalorder %s14, 0
    %p55 = por %p53, %p54
    %p56 = scmp.ne.s32.totalorder %s48, %s50
    %p57 = scmp.eq.s32.totalorder %s19, 1
    %p58 = por %p56, %p57
    %p59 = scmp.ne.s32.totalorder %s50, %s51
    %p60 = scmp.eq.s32.totalorder %s19, 0
    %p61 = por %p59, %p60
    %p62 = scmp.ne.s32.totalorder %s50, %s51
    %p63 = scmp.eq.s32.totalorder %s20, 1
    %p64 = por %p62, %p63
    %p66 = scmp.ne.s32.totalorder %s51, %s65
    %p67 = scmp.eq.s32.totalorder %s20, 0
    %p68 = por %p66, %p67
    %s70 = sadd.s32 %s69, 1
    %p73 = scmp.eq.s32.totalorder %s14, 1
    %p74 = scmp.ne.s32.totalorder %s69, %s71
    %p75 = scmp.eq.s32.totalorder %s14, 0
    %p76 = por %p74, %p75
    %p77 = scmp.ne.s32.totalorder %s69, %s71
    %p78 = scmp.eq.s32.totalorder %s19, 1
    %p79 = por %p77, %p78
    %p80 = scmp.ne.s32.totalorder %s71, %s72
    %p81 = scmp.eq.s32.totalorder %s19, 0
    %p82 = por %p80, %p81
    %p83 = scmp.ne.s32.totalorder %s71, %s72
    %p84 = scmp.eq.s32.totalorder %s20, 1
    %p85 = por %p83, %p84
    %p87 = scmp.ne.s32.totalorder %s72, %s86
    %p88 = scmp.eq.s32.totalorder %s20, 0
    %p89 = por %p87, %p88
    %s91 = sadd.s32 %s90, 1
    %p94 = scmp.eq.s32.totalorder %s14, 1
    %p95 = scmp.ne.s32.totalorder %s90, %s92
    %p96 = scmp.eq.s32.totalorder %s14, 0
    %p97 = por %p95, %p96
    %p98 = scmp.ne.s32.totalorder %s90, %s92
    %p99 = scmp.eq.s32.totalorder %s19, 1
    %p100 = por %p98, %p99
    %p101 = scmp.ne.s32.totalorder %s92, %s93
    %p102 = scmp.eq.s32.totalorder %s19, 0
    %p103 = por %p101, %p102
    %p104 = scmp.ne.s32.totalorder %s92, %s93
    %p105 = scmp.eq.s32.totalorder %s20, 1
    %p106 = por %p104, %p105
    %p108 = scmp.ne.s32.totalorder %s93, %s107
    %p109 = scmp.eq.s32.totalorder %s20, 0
    %p110 = por %p108, %p109
    %s112 = sadd.s32 %s111, 1
    %p115 = scmp.eq.s32.totalorder %s14, 1
    %p116 = scmp.ne.s32.totalorder %s111, %s113
    %p117 = scmp.eq.s32.totalorder %s14, 0
    %p118 = por %p116, %p117
    %p119 = scmp.ne.s32.totalorder %s111, %s113
    %p120 = scmp.eq.s32.totalorder %s19, 1
    %p121 = por %p119, %p120
    %p122 = scmp.ne.s32.totalorder %s113, %s114
    %p123 = scmp.eq.s32.totalorder %s19, 0
    %p124 = por %p122, %p123
    %p125 = scmp.ne.s32.totalorder %s113, %s114
    %p126 = scmp.eq.s32.totalorder %s20, 1
    %p127 = por %p125, %p126
    %p129 = scmp.ne.s32.totalorder %s114, %s128
    %p130 = scmp.eq.s32.totalorder %s20, 0
    %p131 = por %p129, %p130
    %s133 = sadd.s32 %s132, 1
    %p136 = scmp.eq.s32.totalorder %s14, 1
    %p137 = scmp.ne.s32.totalorder %s132, %s134
    %p138 = scmp.eq.s32.totalorder %s14, 0
    %p139 = por %p137, %p138
    %p140 = scmp.ne.s32.totalorder %s132, %s134
    %p141 = scmp.eq.s32.totalorder %s19, 1
    %p142 = por %p140, %p141
    %p143 = scmp.ne.s32.totalorder %s134, %s135
    %p144 = scmp.eq.s32.totalorder %s19, 0
    %p145 = por %p143, %p144
    %p146 = scmp.ne.s32.totalorder %s134, %s135
    %p147 = scmp.eq.s32.totalorder %s20, 1
    %p148 = por %p146, %p147
    %p150 = scmp.ne.s32.totalorder %s135, %s149
    %p151 = scmp.eq.s32.totalorder %s20, 0
    %p152 = por %p150, %p151
    %s154 = sadd.s32 %s153, 1
    %p157 = scmp.eq.s32.totalorder %s14, 1
    %p158 = scmp.ne.s32.totalorder %s153, %s155
    %p159 = scmp.eq.s32.totalorder %s14, 0
    %p160 = por %p158, %p159
    %p161 = scmp.ne.s32.totalorder %s153, %s155
    %p162 = scmp.eq.s32.totalorder %s19, 1
    %p163 = por %p161, %p162
    %p164 = scmp.ne.s32.totalorder %s155, %s156
    %p165 = scmp.eq.s32.totalorder %s19, 0
    %p166 = por %p164, %p165
    %p167 = scmp.ne.s32.totalorder %s155, %s156
    %p168 = scmp.eq.s32.totalorder %s20, 1
    %p169 = por %p167, %p168
    %p171 = scmp.ne.s32.totalorder %s156, %s170
    %p172 = scmp.eq.s32.totalorder %s20, 0
    %p173 = por %p171, %p172
    %s175 = sadd.s32 %s174, 1
    %p178 = scmp.eq.s32.totalorder %s14, 1
    %p179 = scmp.ne.s32.totalorder %s174, %s176
    %p180 = scmp.eq.s32.totalorder %s14, 0
    %p181 = por %p179, %p180
    %p182 = scmp.ne.s32.totalorder %s174, %s176
    %p183 = scmp.eq.s32.totalorder %s19, 1
    %p184 = por %p182, %p183
    %p185 = scmp.ne.s32.totalorder %s176, %s177
    %p186 = scmp.eq.s32.totalorder %s19, 0
    %p187 = por %p185, %p186
    %p188 = scmp.ne.s32.totalorder %s176, %s177
    %p189 = scmp.eq.s32.totalorder %s20, 1
    %p190 = por %p188, %p189
    %p192 = scmp.ne.s32.totalorder %s177, %s191
    %p193 = scmp.eq.s32.totalorder %s20, 0
    %p194 = por %p192, %p193
    %s195 = ssub.s32 %s14, %s21
    %p196 = scmp.eq.s32.totalorder %s195, 0
    %s198 = sadd.s32 %s197, 1
    %s199 = scalar_select %p196, %s197, %s198
    %p202 = pneg %p196
    %p203 = scmp.eq.s32.totalorder %s14, 1
    %p204 = por %p202, %p203
    %p205 = scmp.ne.s32.totalorder %s197, %s200
    %p206 = scmp.eq.s32.totalorder %s14, 0
    %p207 = por %p205, %p206
    %p208 = scmp.ne.s32.totalorder %s197, %s200
    %p209 = scmp.eq.s32.totalorder %s19, 1
    %p210 = por %p208, %p209
    %p211 = scmp.ne.s32.totalorder %s200, %s201
    %p212 = scmp.eq.s32.totalorder %s19, 0
    %p213 = por %p211, %p212
    %p214 = scmp.ne.s32.totalorder %s200, %s201
    %p215 = scmp.eq.s32.totalorder %s20, 1
    %p216 = por %p214, %p215
    %p218 = scmp.ne.s32.totalorder %s201, %s217
    %p219 = scmp.eq.s32.totalorder %s20, 0
    %p220 = por %p218, %p219
    %p221 = scmp.le.s32.totalorder 1, %s14
    %p222 = scmp.lt.s32.totalorder %s14, 3
    %p223 = pnand %p221, %p222
    %p224 = pneg %p223
    // Predicated region
    $region9: #{repc3_forward.1} parent=5 // pred_check
      _
    $region10: #{repc3_forward.1} parent=5 // pred_check_branch
      %226 = sbr.rel (%p223) target = $region12
    $region11: #{repc3_forward.1} parent=5 // pred_region
      %s227 = ssub.s32 %s14, 1
      // Predicated region
      $region13: #{repc3_forward.1} parent=11 // pred_check
        %p228 = pneg %p61
      $region14: #{repc3_forward.1} parent=11 // pred_check_branch
        %230 = sbr.rel (%p228) target = $region16
      $region15: #{repc3_forward.1} parent=11 // pred_region
        _
      $region16: #{repc3_forward.1} parent=11 // pred_fallthru
        _
      // Predicated region
      $region17: #{repc3_forward.1} parent=11 // pred_check
        %p231 = pneg %p82
      $region18: #{repc3_forward.1} parent=11 // pred_check_branch
        %233 = sbr.rel (%p231) target = $region20
      $region19: #{repc3_forward.1} parent=11 // pred_region
        _
      $region20: #{repc3_forward.1} parent=11 // pred_fallthru
        _
      // Predicated region
      $region21: #{repc3_forward.1} parent=11 // pred_check
        %p234 = pneg %p103
      $region22: #{repc3_forward.1} parent=11 // pred_check_branch
        %236 = sbr.rel (%p234) target = $region24
      $region23: #{repc3_forward.1} parent=11 // pred_region
        _
      $region24: #{repc3_forward.1} parent=11 // pred_fallthru
        _
      // Predicated region
      $region25: #{repc3_forward.1} parent=11 // pred_check
        %p237 = pneg %p124
      $region26: #{repc3_forward.1} parent=11 // pred_check_branch
        %239 = sbr.rel (%p237) target = $region28
      $region27: #{repc3_forward.1} parent=11 // pred_region
        _
      $region28: #{repc3_forward.1} parent=11 // pred_fallthru
        _
      // Predicated region
      $region29: #{repc3_forward.1} parent=11 // pred_check
        %p240 = pneg %p145
      $region30: #{repc3_forward.1} parent=11 // pred_check_branch
        %242 = sbr.rel (%p240) target = $region32
      $region31: #{repc3_forward.1} parent=11 // pred_region
        _
      $region32: #{repc3_forward.1} parent=11 // pred_fallthru
        _
      // Predicated region
      $region33: #{repc3_forward.1} parent=11 // pred_check
        %p243 = pneg %p166
      $region34: #{repc3_forward.1} parent=11 // pred_check_branch
        %245 = sbr.rel (%p243) target = $region36
      $region35: #{repc3_forward.1} parent=11 // pred_region
        _
      $region36: #{repc3_forward.1} parent=11 // pred_fallthru
        _
      // Predicated region
      $region37: #{repc3_forward.1} parent=11 // pred_check
        %p246 = pneg %p187
      $region38: #{repc3_forward.1} parent=11 // pred_check_branch
        %248 = sbr.rel (%p246) target = $region40
      $region39: #{repc3_forward.1} parent=11 // pred_region
        _
      $region40: #{repc3_forward.1} parent=11 // pred_fallthru
        _
    $region12: #{repc3_forward.1} parent=5 // pred_fallthru
      _
    %p249 = scmp.lt.s32.totalorder %s14, 2
    // Predicated region
    $region41: #{repc3_forward.1} parent=5 // pred_check
      %p250 = pneg %p249
    $region42: #{repc3_forward.1} parent=5 // pred_check_branch
      %252 = sbr.rel (%p250) target = $region44
    $region43: #{repc3_forward.1} parent=5 // pred_region
      // Predicated region
      $region45: #{repc3_forward.1} parent=43 // pred_check
        %p253 = pneg %p34
      $region46: #{repc3_forward.1} parent=43 // pred_check_branch
        %255 = sbr.rel (%p253) target = $region48
      $region47: #{repc3_forward.1} parent=43 // pred_region
        %p256 = scmp.lt.s32.totalorder %s14, 1
        %s257 = scalar_select %p256, %s14, 1
        %s258 = smul.addr %s257, 2
        %s259 = smul.addr %s258, 4
        %s260 = scalar_lea.vmem %s0, %s259
      $region48: #{repc3_forward.1} parent=43 // pred_fallthru
        _
    $region44: #{repc3_forward.1} parent=5 // pred_fallthru
      _
    %p261 = scmp.le.s32.totalorder 1, %s14
    %p262 = scmp.lt.s32.totalorder %s14, 3
    %p263 = pnand %p261, %p262
    %p264 = pneg %p263
    // Predicated region
    $region49: #{repc3_forward.1} parent=5 // pred_check
      _
    $region50: #{repc3_forward.1} parent=5 // pred_check_branch
      %266 = sbr.rel (%p263) target = $region52
    $region51: #{repc3_forward.1} parent=5 // pred_region
      %s267 = ssub.s32 %s14, 1
      %p268 = scmp.lt.s32.totalorder %s19, 1
      %s269 = scalar_select %p268, %s19, 1
      %s270 = smul.addr %s269, 2
      %s271 = smul.addr %s270, 4
      %s272 = scalar_lea.vmem %s0, %s271
      %p273 = pneg %p40
      %p274 = pneg %p37
      %p275 = pneg %p61
      %p276 = pneg %p58
      %p277 = pneg %p82
      %p278 = pneg %p79
      %p279 = pneg %p103
      %p280 = pneg %p100
      %p281 = pneg %p124
      %p282 = pneg %p121
      %p283 = pneg %p145
      %p284 = pneg %p142
      %p285 = pneg %p166
      %p286 = pneg %p163
      %p287 = pneg %p187
      %p288 = pneg %p184
      %p289 = pneg %p213
      %p290 = pneg %p210
      %p291 = scmp.lt.s32.totalorder %s19, 1
      %s292 = scalar_select %p291, %s19, 1
      %s293 = smul.addr %s292, 2
      %s294 = smul.addr %s293, 8
      %s295 = scalar_lea.vmem %s8, %s294
      %p296 = scmp.lt.s32.totalorder %s19, 1
      %s297 = scalar_select %p296, %s19, 1
      %s298 = smul.addr %s297, 2
      %s299 = smul.addr %s298, 4
      %s300 = scalar_lea.vmem %s0, %s299
      %p301 = scmp.lt.s32.totalorder %s19, 1
      %s302 = scalar_select %p301, %s19, 1
      %s303 = smul.addr %s302, 2
      %s304 = smul.addr %s303, 8
      %s305 = scalar_lea.vmem %s8, %s304
      %v307 = vld [vmem:[%s300] sm:$0xff]
      %v309 = vcombine.high %v307, %v307
      %v311 = vpack.c.bf16 %v307, %v307
      %v312 = vpack.c.bf16 %v309, %v309
      %v313 = vld [vmem:[%s2] sm:$0xf]
      %v314 = vld [vmem:[%s3] sm:$0xff]
      %316 = vset.pattern.permute.xlu0 0
      %317 = vperm.xlu0 %316, %v314
      %v318 = vpop.permute.xlu0 %317
      %vm320 = vcmask 31744
      %v322 = vsel %vm320, %v313, 0
      %vm324 = vcmask 1041408
      %v326 = vsel %vm324, %v311, 0
      %v329 = vsel %vm324, %v312, 0
      %331 = vmatprep.subr.bf16.mxu0 %v329
      %332 = vmatpush1.bf16.msra.mxu0 %v326
      %333 = vmatprep.subr.bf16.mxu0 0
      %334 = vmatpush1.bf16.msra.mxu0 0
      %335 = vmatprep.subr.bf16.mxu0 0
      %336 = vmatpush1.bf16.msra.mxu0 0
      %337 = vmatprep.subr.bf16.mxu0 0
      %338 = vmatpush1.bf16.msra.mxu0 0
      %339 = vmatprep.subr.bf16.mxu0 0
      %340 = vmatpush1.bf16.msra.mxu0 0
      %341 = vmatprep.subr.bf16.mxu0 0
      %342 = vmatpush1.bf16.msra.mxu0 0
      %343 = vmatprep.subr.bf16.mxu0 0
      %344 = vmatpush1.bf16.msra.mxu0 0
      %345 = vmatprep.subr.bf16.mxu0 0
      %346 = vmatpush1.bf16.msra.mxu0 0
      %347 = vmatprep.subr.bf16.mxu0 0
      %348 = vmatpush1.bf16.msra.mxu0 0
      %349 = vmatprep.subr.bf16.mxu0 0
      %350 = vmatpush1.bf16.msra.mxu0 0
      %351 = vmatprep.subr.bf16.mxu0 0
      %352 = vmatpush1.bf16.msra.mxu0 0
      %353 = vmatprep.subr.bf16.mxu0 0
      %354 = vmatpush1.bf16.msra.mxu0 0
      %355 = vmatprep.subr.bf16.mxu0 0
      %356 = vmatpush1.bf16.msra.mxu0 0
      %357 = vmatprep.subr.bf16.mxu0 0
      %358 = vmatpush1.bf16.msra.mxu0 0
      %359 = vmatprep.subr.bf16.mxu0 0
      %360 = vmatpush1.bf16.msra.mxu0 0
      %361 = vmatprep.subr.bf16.mxu0 0
      %362 = vmatpush1.bf16.msra.mxu0 0
      %363 = vmatprep.mubr.bf16.mxu0 0
      %364 = vmatmul.mubr.bf16.gmra.mrb[0].mxu0 %v322
      %v365 = vpop.f32.mrb[0].mxu0
      %v366 = vadd.f32 %v318, %v365
      %v367 = vpop.f32.mrb[0].mxu0
      %v368 = vadd.f32 %v318, %v367
      %v369 = vpop.f32.mrb[0].mxu0
      %v370 = vpop.f32.mrb[0].mxu0
      %371 = vdwg.mxu0
      %v372 = vxor.u32 %v366, 2147483648
      %v373 = vxor.u32 %v368, 2147483648
      %v374 = vmul.f32 %v372, 1.442695
      %v375 = vpow.pop %v374
      %v376 = vmul.f32 %v373, 1.442695
      %v377 = vpow.pop %v376
      %v378 = vadd.f32 %v375, 1.0
      %v379 = vadd.f32 %v377, 1.0
      %v380 = vrcp.pop %v378
      %v381 = vmul.f32 1.0, %v380
      %v382 = vrcp.pop %v379
      %v383 = vmul.f32 1.0, %v382
      %v384 = vmul.f32 %v366, %v381
      %v385 = vmul.f32 %v368, %v383
      %v386 = vld [vmem:[%s4] sm:$0xf]
      %v387 = vld [vmem:[%s5] sm:$0xff]
      %389 = vset.pattern.permute.xlu0 0
      %390 = vperm.xlu0 %389, %v387
      %v391 = vpop.permute.xlu0 %390
      %v394 = vsel %vm320, %v386, 0
      %396 = vmatprep.subr.bf16.mxu0 %v329
      %397 = vmatpush1.bf16.msra.mxu0 %v326
      %398 = vmatprep.subr.bf16.mxu0 0
      %399 = vmatpush1.bf16.msra.mxu0 0
      %400 = vmatprep.subr.bf16.mxu0 0
      %401 = vmatpush1.bf16.msra.mxu0 0
      %402 = vmatprep.subr.bf16.mxu0 0
      %403 = vmatpush1.bf16.msra.mxu0 0
      %404 = vmatprep.subr.bf16.mxu0 0
      %405 = vmatpush1.bf16.msra.mxu0 0
      %406 = vmatprep.subr.bf16.mxu0 0
      %407 = vmatpush1.bf16.msra.mxu0 0
      %408 = vmatprep.subr.bf16.mxu0 0
      %409 = vmatpush1.bf16.msra.mxu0 0
      %410 = vmatprep.subr.bf16.mxu0 0
      %411 = vmatpush1.bf16.msra.mxu0 0
      %412 = vmatprep.subr.bf16.mxu0 0
      %413 = vmatpush1.bf16.msra.mxu0 0
      %414 = vmatprep.subr.bf16.mxu0 0
      %415 = vmatpush1.bf16.msra.mxu0 0
      %416 = vmatprep.subr.bf16.mxu0 0
      %417 = vmatpush1.bf16.msra.mxu0 0
      %418 = vmatprep.subr.bf16.mxu0 0
      %419 = vmatpush1.bf16.msra.mxu0 0
      %420 = vmatprep.subr.bf16.mxu0 0
      %421 = vmatpush1.bf16.msra.mxu0 0
      %422 = vmatprep.subr.bf16.mxu0 0
      %423 = vmatpush1.bf16.msra.mxu0 0
      %424 = vmatprep.subr.bf16.mxu0 0
      %425 = vmatpush1.bf16.msra.mxu0 0
      %426 = vmatprep.subr.bf16.mxu0 0
      %427 = vmatpush1.bf16.msra.mxu0 0
      %428 = vmatprep.mubr.bf16.mxu0 0
      %429 = vmatmul.mubr.bf16.gmra.mrb[0].mxu0 %v394
      %v430 = vpop.f32.mrb[0].mxu0
      %v431 = vadd.f32 %v391, %v430
      %v432 = vpop.f32.mrb[0].mxu0
      %v433 = vadd.f32 %v391, %v432
      %v434 = vpop.f32.mrb[0].mxu0
      %v435 = vpop.f32.mrb[0].mxu0
      %436 = vdwg.mxu0
      %v437 = vxor.u32 %v431, 2147483648
      %v438 = vxor.u32 %v433, 2147483648
      %v439 = vmul.f32 %v437, 1.442695
      %v440 = vpow.pop %v439
      %v441 = vmul.f32 %v438, 1.442695
      %v442 = vpow.pop %v441
      %v443 = vadd.f32 %v440, 1.0
      %v444 = vadd.f32 %v442, 1.0
      %v445 = vrcp.pop %v443
      %v446 = vmul.f32 1.0, %v445
      %v447 = vrcp.pop %v444
      %v448 = vmul.f32 1.0, %v447
      %v449 = vmul.f32 %v431, %v446
      %v450 = vmul.f32 %v433, %v448
      %451 = vrot.lane.b32.xlu0 %v384, 17
      %v452 = vpop.permute.xlu0 %451
      %453 = vrot.lane.b32.xlu0 %v385, 17
      %v454 = vpop.permute.xlu0 %453
      %v455 = vlaneseq
      %v456 = vand.u32 %v455, 127
      %vm457 = vcmp.lt.s32.totalorder %v456, 17
      %v458 = vsel %vm457, %v452, %v454
      %v459 = vsel %vm457, %v454, %v452
      %v460 = vld [vmem:[%s1] sm:$0xff]
      %v461 = vld [vmem:[%s1 + $0x8] sm:$0xff]
      %v462 = vmul.f32 %v459, %v460
      %v463 = vmul.f32 %v458, %v461
      %v464 = vld [vmem:[%s6] sm:$0xf]
      %v465 = vpack.c.bf16 %v462, %v462
      %v466 = vpack.c.bf16 %v463, %v463
      %467 = vrot.lane.b32.xlu0 %v384, 16
      %v468 = vpop.permute.xlu0 %467
      %469 = vrot.lane.b32.xlu0 %v385, 16
      %v470 = vpop.permute.xlu0 %469
      %vm471 = vcmp.lt.s32.totalorder %v456, 16
      %v472 = vsel %vm471, %v468, %v470
      %v473 = vsel %vm471, %v470, %v468
      %s474 = scalar_lea.vmem %s1, 16
      %v475 = vld [vmem:[%s474] sm:$0xff]
      %v476 = vld [vmem:[%s474 + $0x8] sm:$0xff]
      %v477 = vmul.f32 %v473, %v475
      %v478 = vmul.f32 %v472, %v476
      %s479 = scalar_lea.vmem %s6, 4
      %v480 = vld [vmem:[%s479] sm:$0xf]
      %v481 = vpack.c.bf16 %v477, %v477
      %v482 = vpack.c.bf16 %v478, %v478
      %vm483 = vcmask 64512
      %v485 = vsel %vm483, %v480, 0
      %vm487 = vcmask 1043456
      %v489 = vsel %vm487, %v481, 0
      %v492 = vsel %vm487, %v482, 0
      %494 = vmatprep.subr.bf16.mxu0 %v492
      %495 = vmatpush1.bf16.msra.mxu0 %v489
      %496 = vmatprep.subr.bf16.mxu0 0
      %497 = vmatpush1.bf16.msra.mxu0 0
      %498 = vmatprep.subr.bf16.mxu0 0
      %499 = vmatpush1.bf16.msra.mxu0 0
      %500 = vmatprep.subr.bf16.mxu0 0
      %501 = vmatpush1.bf16.msra.mxu0 0
      %502 = vmatprep.subr.bf16.mxu0 0
      %503 = vmatpush1.bf16.msra.mxu0 0
      %504 = vmatprep.subr.bf16.mxu0 0
      %505 = vmatpush1.bf16.msra.mxu0 0
      %506 = vmatprep.subr.bf16.mxu0 0
      %507 = vmatpush1.bf16.msra.mxu0 0
      %508 = vmatprep.subr.bf16.mxu0 0
      %509 = vmatpush1.bf16.msra.mxu0 0
      %510 = vmatprep.subr.bf16.mxu0 0
      %511 = vmatpush1.bf16.msra.mxu0 0
      %512 = vmatprep.subr.bf16.mxu0 0
      %513 = vmatpush1.bf16.msra.mxu0 0
      %514 = vmatprep.subr.bf16.mxu0 0
      %515 = vmatpush1.bf16.msra.mxu0 0
      %516 = vmatprep.subr.bf16.mxu0 0
      %517 = vmatpush1.bf16.msra.mxu0 0
      %518 = vmatprep.subr.bf16.mxu0 0
      %519 = vmatpush1.bf16.msra.mxu0 0
      %520 = vmatprep.subr.bf16.mxu0 0
      %521 = vmatpush1.bf16.msra.mxu0 0
      %522 = vmatprep.subr.bf16.mxu0 0
      %523 = vmatpush1.bf16.msra.mxu0 0
      %524 = vmatprep.subr.bf16.mxu0 0
      %525 = vmatpush1.bf16.msra.mxu0 0
      %526 = vmatprep.mubr.bf16.mxu0 0
      %527 = vmatmul.mubr.bf16.gmra.mrb[0].mxu0 %v485
      %v528 = vpop.f32.mrb[0].mxu0
      %v529 = vadd.f32 0.0, %v528
      %v530 = vpop.f32.mrb[0].mxu0
      %v531 = vadd.f32 0.0, %v530
      %v532 = vpop.f32.mrb[0].mxu0
      %v533 = vpop.f32.mrb[0].mxu0
      %534 = vdwg.mxu0
      %v536 = vsel %vm483, %v464, 0
      %v539 = vsel %vm487, %v465, 0
      %v542 = vsel %vm487, %v466, 0
      %544 = vmatprep.subr.bf16.mxu0 %v542
      %545 = vmatpush1.bf16.msra.mxu0 %v539
      %546 = vmatprep.subr.bf16.mxu0 0
      %547 = vmatpush1.bf16.msra.mxu0 0
      %548 = vmatprep.subr.bf16.mxu0 0
      %549 = vmatpush1.bf16.msra.mxu0 0
      %550 = vmatprep.subr.bf16.mxu0 0
      %551 = vmatpush1.bf16.msra.mxu0 0
      %552 = vmatprep.subr.bf16.mxu0 0
      %553 = vmatpush1.bf16.msra.mxu0 0
      %554 = vmatprep.subr.bf16.mxu0 0
      %555 = vmatpush1.bf16.msra.mxu0 0
      %556 = vmatprep.subr.bf16.mxu0 0
      %557 = vmatpush1.bf16.msra.mxu0 0
      %558 = vmatprep.subr.bf16.mxu0 0
      %559 = vmatpush1.bf16.msra.mxu0 0
      %560 = vmatprep.subr.bf16.mxu0 0
      %561 = vmatpush1.bf16.msra.mxu0 0
      %562 = vmatprep.subr.bf16.mxu0 0
      %563 = vmatpush1.bf16.msra.mxu0 0
      %564 = vmatprep.subr.bf16.mxu0 0
      %565 = vmatpush1.bf16.msra.mxu0 0
      %566 = vmatprep.subr.bf16.mxu0 0
      %567 = vmatpush1.bf16.msra.mxu0 0
      %568 = vmatprep.subr.bf16.mxu0 0
      %569 = vmatpush1.bf16.msra.mxu0 0
      %570 = vmatprep.subr.bf16.mxu0 0
      %571 = vmatpush1.bf16.msra.mxu0 0
      %572 = vmatprep.subr.bf16.mxu0 0
      %573 = vmatpush1.bf16.msra.mxu0 0
      %574 = vmatprep.subr.bf16.mxu0 0
      %575 = vmatpush1.bf16.msra.mxu0 0
      %576 = vmatprep.mubr.bf16.mxu0 0
      %577 = vmatmul.mubr.bf16.gmra.mrb[0].mxu0 %v536
      %v578 = vpop.f32.mrb[0].mxu0
      %v579 = vadd.f32 %v529, %v578
      %v580 = vpop.f32.mrb[0].mxu0
      %v581 = vadd.f32 %v531, %v580
      %v582 = vpop.f32.mrb[0].mxu0
      %v583 = vpop.f32.mrb[0].mxu0
      %584 = vdwg.mxu0
      %585 = vrot.lane.b32.xlu0 %v384, 15
      %v586 = vpop.permute.xlu0 %585
      %587 = vrot.lane.b32.xlu0 %v385, 15
      %v588 = vpop.permute.xlu0 %587
      %vm589 = vcmp.lt.s32.totalorder %v456, 15
      %v590 = vsel %vm589, %v586, %v588
      %v591 = vsel %vm589, %v588, %v586
      %s592 = scalar_lea.vmem %s1, 32
      %v593 = vld [vmem:[%s592] sm:$0xff]
      %v594 = vld [vmem:[%s592 + $0x8] sm:$0xff]
      %v595 = vmul.f32 %v591, %v593
      %v596 = vmul.f32 %v590, %v594
      %s597 = scalar_lea.vmem %s6, 8
      %v598 = vld [vmem:[%s597] sm:$0xf]
      %v599 = vpack.c.bf16 %v595, %v595
      %v600 = vpack.c.bf16 %v596, %v596
      %v602 = vsel %vm483, %v598, 0
      %v605 = vsel %vm487, %v599, 0
      %v608 = vsel %vm487, %v600, 0
      %610 = vmatprep.subr.bf16.mxu0 %v608
      %611 = vmatpush1.bf16.msra.mxu0 %v605
      %612 = vmatprep.subr.bf16.mxu0 0
      %613 = vmatpush1.bf16.msra.mxu0 0
      %614 = vmatprep.subr.bf16.mxu0 0
      %615 = vmatpush1.bf16.msra.mxu0 0
      %616 = vmatprep.subr.bf16.mxu0 0
      %617 = vmatpush1.bf16.msra.mxu0 0
      %618 = vmatprep.subr.bf16.mxu0 0
      %619 = vmatpush1.bf16.msra.mxu0 0
      %620 = vmatprep.subr.bf16.mxu0 0
      %621 = vmatpush1.bf16.msra.mxu0 0
      %622 = vmatprep.subr.bf16.mxu0 0
      %623 = vmatpush1.bf16.msra.mxu0 0
      %624 = vmatprep.subr.bf16.mxu0 0
      %625 = vmatpush1.bf16.msra.mxu0 0
      %626 = vmatprep.subr.bf16.mxu0 0
      %627 = vmatpush1.bf16.msra.mxu0 0
      %628 = vmatprep.subr.bf16.mxu0 0
      %629 = vmatpush1.bf16.msra.mxu0 0
      %630 = vmatprep.subr.bf16.mxu0 0
      %631 = vmatpush1.bf16.msra.mxu0 0
      %632 = vmatprep.subr.bf16.mxu0 0
      %633 = vmatpush1.bf16.msra.mxu0 0
      %634 = vmatprep.subr.bf16.mxu0 0
      %635 = vmatpush1.bf16.msra.mxu0 0
      %636 = vmatprep.subr.bf16.mxu0 0
      %637 = vmatpush1.bf16.msra.mxu0 0
      %638 = vmatprep.subr.bf16.mxu0 0
      %639 = vmatpush1.bf16.msra.mxu0 0
      %640 = vmatprep.subr.bf16.mxu0 0
      %641 = vmatpush1.bf16.msra.mxu0 0
      %642 = vmatprep.mubr.bf16.mxu0 0
      %643 = vmatmul.mubr.bf16.gmra.mrb[0].mxu0 %v602
      %v644 = vpop.f32.mrb[0].mxu0
      %v645 = vadd.f32 0.0, %v644
      %v646 = vpop.f32.mrb[0].mxu0
      %v647 = vadd.f32 0.0, %v646
      %v648 = vpop.f32.mrb[0].mxu0
      %v649 = vpop.f32.mrb[0].mxu0
      %650 = vdwg.mxu0
      %v651 = vadd.f32 %v579, %v645
      %v652 = vadd.f32 %v581, %v647
      %653 = vrot.lane.b32.xlu0 %v384, 1
      %v654 = vpop.permute.xlu0 %653
      %655 = vrot.lane.b32.xlu0 %v385, 1
      %v656 = vpop.permute.xlu0 %655
      %vm657 = vcmp.lt.s32.totalorder %v456, 1
      %v658 = vsel %vm657, %v654, %v656
      %v659 = vsel %vm657, %v656, %v654
      %s660 = scalar_lea.vmem %s1, 48
      %v661 = vld [vmem:[%s660] sm:$0xff]
      %v662 = vld [vmem:[%s660 + $0x8] sm:$0xff]
      %v663 = vmul.f32 %v659, %v661
      %v664 = vmul.f32 %v658, %v662
      %s665 = scalar_lea.vmem %s6, 12
      %v666 = vld [vmem:[%s665] sm:$0xf]
      %v667 = vpack.c.bf16 %v663, %v663
      %v668 = vpack.c.bf16 %v664, %v664
      %v670 = vsel %vm483, %v666, 0
      %v673 = vsel %vm487, %v667, 0
      %v676 = vsel %vm487, %v668, 0
      %678 = vmatprep.subr.bf16.mxu0 %v676
      %679 = vmatpush1.bf16.msra.mxu0 %v673
      %680 = vmatprep.subr.bf16.mxu0 0
      %681 = vmatpush1.bf16.msra.mxu0 0
      %682 = vmatprep.subr.bf16.mxu0 0
      %683 = vmatpush1.bf16.msra.mxu0 0
      %684 = vmatprep.subr.bf16.mxu0 0
      %685 = vmatpush1.bf16.msra.mxu0 0
      %686 = vmatprep.subr.bf16.mxu0 0
      %687 = vmatpush1.bf16.msra.mxu0 0
      %688 = vmatprep.subr.bf16.mxu0 0
      %689 = vmatpush1.bf16.msra.mxu0 0
      %690 = vmatprep.subr.bf16.mxu0 0
      %691 = vmatpush1.bf16.msra.mxu0 0
      %692 = vmatprep.subr.bf16.mxu0 0
      %693 = vmatpush1.bf16.msra.mxu0 0
      %694 = vmatprep.subr.bf16.mxu0 0
      %695 = vmatpush1.bf16.msra.mxu0 0
      %696 = vmatprep.subr.bf16.mxu0 0
      %697 = vmatpush1.bf16.msra.mxu0 0
      %698 = vmatprep.subr.bf16.mxu0 0
      %699 = vmatpush1.bf16.msra.mxu0 0
      %700 = vmatprep.subr.bf16.mxu0 0
      %701 = vmatpush1.bf16.msra.mxu0 0
      %702 = vmatprep.subr.bf16.mxu0 0
      %703 = vmatpush1.bf16.msra.mxu0 0
      %704 = vmatprep.subr.bf16.mxu0 0
      %705 = vmatpush1.bf16.msra.mxu0 0
      %706 = vmatprep.subr.bf16.mxu0 0
      %707 = vmatpush1.bf16.msra.mxu0 0
      %708 = vmatprep.subr.bf16.mxu0 0
      %709 = vmatpush1.bf16.msra.mxu0 0
      %710 = vmatprep.mubr.bf16.mxu0 0
      %711 = vmatmul.mubr.bf16.gmra.mrb[0].mxu0 %v670
      %v712 = vpop.f32.mrb[0].mxu0
      %v713 = vadd.f32 0.0, %v712
      %v714 = vpop.f32.mrb[0].mxu0
      %v715 = vadd.f32 0.0, %v714
      %v716 = vpop.f32.mrb[0].mxu0
      %v717 = vpop.f32.mrb[0].mxu0
      %718 = vdwg.mxu0
      %v719 = vadd.f32 %v651, %v713
      %v720 = vadd.f32 %v652, %v715
      %s721 = scalar_lea.vmem %s6, 16
      %v722 = vld [vmem:[%s721] sm:$0xf]
      %v723 = vpack.c.bf16 %v384, %v384
      %v724 = vpack.c.bf16 %v385, %v385
      %v726 = vsel %vm483, %v722, 0
      %v729 = vsel %vm487, %v723, 0
      %v732 = vsel %vm487, %v724, 0
      %734 = vmatprep.subr.bf16.mxu0 %v732
      %735 = vmatpush1.bf16.msra.mxu0 %v729
      %736 = vmatprep.subr.bf16.mxu0 0
      %737 = vmatpush1.bf16.msra.mxu0 0
      %738 = vmatprep.subr.bf16.mxu0 0
      %739 = vmatpush1.bf16.msra.mxu0 0
      %740 = vmatprep.subr.bf16.mxu0 0
      %741 = vmatpush1.bf16.msra.mxu0 0
      %742 = vmatprep.subr.bf16.mxu0 0
      %743 = vmatpush1.bf16.msra.mxu0 0
      %744 = vmatprep.subr.bf16.mxu0 0
      %745 = vmatpush1.bf16.msra.mxu0 0
      %746 = vmatprep.subr.bf16.mxu0 0
      %747 = vmatpush1.bf16.msra.mxu0 0
      %748 = vmatprep.subr.bf16.mxu0 0
      %749 = vmatpush1.bf16.msra.mxu0 0
      %750 = vmatprep.subr.bf16.mxu0 0
      %751 = vmatpush1.bf16.msra.mxu0 0
      %752 = vmatprep.subr.bf16.mxu0 0
      %753 = vmatpush1.bf16.msra.mxu0 0
      %754 = vmatprep.subr.bf16.mxu0 0
      %755 = vmatpush1.bf16.msra.mxu0 0
      %756 = vmatprep.subr.bf16.mxu0 0
      %757 = vmatpush1.bf16.msra.mxu0 0
      %758 = vmatprep.subr.bf16.mxu0 0
      %759 = vmatpush1.bf16.msra.mxu0 0
      %760 = vmatprep.subr.bf16.mxu0 0
      %761 = vmatpush1.bf16.msra.mxu0 0
      %762 = vmatprep.subr.bf16.mxu0 0
      %763 = vmatpush1.bf16.msra.mxu0 0
      %764 = vmatprep.subr.bf16.mxu0 0
      %765 = vmatpush1.bf16.msra.mxu0 0
      %766 = vmatprep.mubr.bf16.mxu0 0
      %767 = vmatmul.mubr.bf16.gmra.mrb[0].mxu0 %v726
      %v768 = vpop.f32.mrb[0].mxu0
      %v769 = vadd.f32 0.0, %v768
      %v770 = vpop.f32.mrb[0].mxu0
      %v771 = vadd.f32 0.0, %v770
      %v772 = vpop.f32.mrb[0].mxu0
      %v773 = vpop.f32.mrb[0].mxu0
      %774 = vdwg.mxu0
      %v775 = vadd.f32 %v719, %v769
      %v776 = vadd.f32 %v720, %v771
      %777 = vrot.lane.b32.xlu0 %v384, 127
      %v778 = vpop.permute.xlu0 %777
      %779 = vrot.lane.b32.xlu0 %v385, 127
      %v780 = vpop.permute.xlu0 %779
      %vm781 = vcmp.lt.s32.totalorder %v456, 127
      %v782 = vsel %vm781, %v778, %v780
      %v783 = vsel %vm781, %v780, %v778
      %s784 = scalar_lea.vmem %s1, 80
      %v785 = vld [vmem:[%s784] sm:$0xff]
      %v786 = vld [vmem:[%s784 + $0x8] sm:$0xff]
      %v787 = vmul.f32 %v782, %v785
      %v788 = vmul.f32 %v783, %v786
      %s789 = scalar_lea.vmem %s6, 20
      %v790 = vld [vmem:[%s789] sm:$0xf]
      %v791 = vpack.c.bf16 %v787, %v787
      %v792 = vpack.c.bf16 %v788, %v788
      %v794 = vsel %vm483, %v790, 0
      %v797 = vsel %vm487, %v791, 0
      %v800 = vsel %vm487, %v792, 0
      %802 = vmatprep.subr.bf16.mxu0 %v800
      %803 = vmatpush1.bf16.msra.mxu0 %v797
      %804 = vmatprep.subr.bf16.mxu0 0
      %805 = vmatpush1.bf16.msra.mxu0 0
      %806 = vmatprep.subr.bf16.mxu0 0
      %807 = vmatpush1.bf16.msra.mxu0 0
      %808 = vmatprep.subr.bf16.mxu0 0
      %809 = vmatpush1.bf16.msra.mxu0 0
      %810 = vmatprep.subr.bf16.mxu0 0
      %811 = vmatpush1.bf16.msra.mxu0 0
      %812 = vmatprep.subr.bf16.mxu0 0
      %813 = vmatpush1.bf16.msra.mxu0 0
      %814 = vmatprep.subr.bf16.mxu0 0
      %815 = vmatpush1.bf16.msra.mxu0 0
      %816 = vmatprep.subr.bf16.mxu0 0
      %817 = vmatpush1.bf16.msra.mxu0 0
      %818 = vmatprep.subr.bf16.mxu0 0
      %819 = vmatpush1.bf16.msra.mxu0 0
      %820 = vmatprep.subr.bf16.mxu0 0
      %821 = vmatpush1.bf16.msra.mxu0 0
      %822 = vmatprep.subr.bf16.mxu0 0
      %823 = vmatpush1.bf16.msra.mxu0 0
      %824 = vmatprep.subr.bf16.mxu0 0
      %825 = vmatpush1.bf16.msra.mxu0 0
      %826 = vmatprep.subr.bf16.mxu0 0
      %827 = vmatpush1.bf16.msra.mxu0 0
      %828 = vmatprep.subr.bf16.mxu0 0
      %829 = vmatpush1.bf16.msra.mxu0 0
      %830 = vmatprep.subr.bf16.mxu0 0
      %831 = vmatpush1.bf16.msra.mxu0 0
      %832 = vmatprep.subr.bf16.mxu0 0
      %833 = vmatpush1.bf16.msra.mxu0 0
      %834 = vmatprep.mubr.bf16.mxu0 0
      %835 = vmatmul.mubr.bf16.gmra.mrb[0].mxu0 %v794
      %v836 = vpop.f32.mrb[0].mxu0
      %v837 = vadd.f32 0.0, %v836
      %v838 = vpop.f32.mrb[0].mxu0
      %v839 = vadd.f32 0.0, %v838
      %v840 = vpop.f32.mrb[0].mxu0
      %v841 = vpop.f32.mrb[0].mxu0
      %842 = vdwg.mxu0
      %v843 = vadd.f32 %v775, %v837
      %v844 = vadd.f32 %v776, %v839
      %845 = vrot.lane.b32.xlu0 %v384, 113
      %v846 = vpop.permute.xlu0 %845
      %847 = vrot.lane.b32.xlu0 %v385, 113
      %v848 = vpop.permute.xlu0 %847
      %vm849 = vcmp.lt.s32.totalorder %v456, 113
      %v850 = vsel %vm849, %v846, %v848
      %v851 = vsel %vm849, %v848, %v846
      %s852 = scalar_lea.vmem %s1, 96
      %v853 = vld [vmem:[%s852] sm:$0xff]
      %v854 = vld [vmem:[%s852 + $0x8] sm:$0xff]
      %v855 = vmul.f32 %v850, %v853
      %v856 = vmul.f32 %v851, %v854
      %s857 = scalar_lea.vmem %s6, 24
      %v858 = vld [vmem:[%s857] sm:$0xf]
      %v859 = vpack.c.bf16 %v855, %v855
      %v860 = vpack.c.bf16 %v856, %v856
      %v862 = vsel %vm483, %v858, 0
      %v865 = vsel %vm487, %v859, 0
      %v868 = vsel %vm487, %v860, 0
      %870 = vmatprep.subr.bf16.mxu0 %v868
      %871 = vmatpush1.bf16.msra.mxu0 %v865
      %872 = vmatprep.subr.bf16.mxu0 0
      %873 = vmatpush1.bf16.msra.mxu0 0
      %874 = vmatprep.subr.bf16.mxu0 0
      %875 = vmatpush1.bf16.msra.mxu0 0
      %876 = vmatprep.subr.bf16.mxu0 0
      %877 = vmatpush1.bf16.msra.mxu0 0
      %878 = vmatprep.subr.bf16.mxu0 0
      %879 = vmatpush1.bf16.msra.mxu0 0
      %880 = vmatprep.subr.bf16.mxu0 0
      %881 = vmatpush1.bf16.msra.mxu0 0
      %882 = vmatprep.subr.bf16.mxu0 0
      %883 = vmatpush1.bf16.msra.mxu0 0
      %884 = vmatprep.subr.bf16.mxu0 0
      %885 = vmatpush1.bf16.msra.mxu0 0
      %886 = vmatprep.subr.bf16.mxu0 0
      %887 = vmatpush1.bf16.msra.mxu0 0
      %888 = vmatprep.subr.bf16.mxu0 0
      %889 = vmatpush1.bf16.msra.mxu0 0
      %890 = vmatprep.subr.bf16.mxu0 0
      %891 = vmatpush1.bf16.msra.mxu0 0
      %892 = vmatprep.subr.bf16.mxu0 0
      %893 = vmatpush1.bf16.msra.mxu0 0
      %894 = vmatprep.subr.bf16.mxu0 0
      %895 = vmatpush1.bf16.msra.mxu0 0
      %896 = vmatprep.subr.bf16.mxu0 0
      %897 = vmatpush1.bf16.msra.mxu0 0
      %898 = vmatprep.subr.bf16.mxu0 0
      %899 = vmatpush1.bf16.msra.mxu0 0
      %900 = vmatprep.subr.bf16.mxu0 0
      %901 = vmatpush1.bf16.msra.mxu0 0
      %902 = vmatprep.mubr.bf16.mxu0 0
      %903 = vmatmul.mubr.bf16.gmra.mrb[0].mxu0 %v862
      %v904 = vpop.f32.mrb[0].mxu0
      %v905 = vadd.f32 0.0, %v904
      %v906 = vpop.f32.mrb[0].mxu0
      %v907 = vadd.f32 0.0, %v906
      %v908 = vpop.f32.mrb[0].mxu0
      %v909 = vpop.f32.mrb[0].mxu0
      %910 = vdwg.mxu0
      %v911 = vadd.f32 %v843, %v905
      %v912 = vadd.f32 %v844, %v907
      %913 = vrot.lane.b32.xlu0 %v384, 112
      %v914 = vpop.permute.xlu0 %913
      %915 = vrot.lane.b32.xlu0 %v385, 112
      %v916 = vpop.permute.xlu0 %915
      %vm917 = vcmp.lt.s32.totalorder %v456, 112
      %v918 = vsel %vm917, %v914, %v916
      %v919 = vsel %vm917, %v916, %v914
      %s920 = scalar_lea.vmem %s1, 112
      %v921 = vld [vmem:[%s920] sm:$0xff]
      %v922 = vld [vmem:[%s920 + $0x8] sm:$0xff]
      %v923 = vmul.f32 %v918, %v921
      %v924 = vmul.f32 %v919, %v922
      %s925 = scalar_lea.vmem %s6, 28
      %v926 = vld [vmem:[%s925] sm:$0xf]
      %v927 = vpack.c.bf16 %v923, %v923
      %v928 = vpack.c.bf16 %v924, %v924
      %v930 = vsel %vm483, %v926, 0
      %v933 = vsel %vm487, %v927, 0
      %v936 = vsel %vm487, %v928, 0
      %938 = vmatprep.subr.bf16.mxu0 %v936
      %939 = vmatpush1.bf16.msra.mxu0 %v933
      %940 = vmatprep.subr.bf16.mxu0 0
      %941 = vmatpush1.bf16.msra.mxu0 0
      %942 = vmatprep.subr.bf16.mxu0 0
      %943 = vmatpush1.bf16.msra.mxu0 0
      %944 = vmatprep.subr.bf16.mxu0 0
      %945 = vmatpush1.bf16.msra.mxu0 0
      %946 = vmatprep.subr.bf16.mxu0 0
      %947 = vmatpush1.bf16.msra.mxu0 0
      %948 = vmatprep.subr.bf16.mxu0 0
      %949 = vmatpush1.bf16.msra.mxu0 0
      %950 = vmatprep.subr.bf16.mxu0 0
      %951 = vmatpush1.bf16.msra.mxu0 0
      %952 = vmatprep.subr.bf16.mxu0 0
      %953 = vmatpush1.bf16.msra.mxu0 0
      %954 = vmatprep.subr.bf16.mxu0 0
      %955 = vmatpush1.bf16.msra.mxu0 0
      %956 = vmatprep.subr.bf16.mxu0 0
      %957 = vmatpush1.bf16.msra.mxu0 0
      %958 = vmatprep.subr.bf16.mxu0 0
      %959 = vmatpush1.bf16.msra.mxu0 0
      %960 = vmatprep.subr.bf16.mxu0 0
      %961 = vmatpush1.bf16.msra.mxu0 0
      %962 = vmatprep.subr.bf16.mxu0 0
      %963 = vmatpush1.bf16.msra.mxu0 0
      %964 = vmatprep.subr.bf16.mxu0 0
      %965 = vmatpush1.bf16.msra.mxu0 0
      %966 = vmatprep.subr.bf16.mxu0 0
      %967 = vmatpush1.bf16.msra.mxu0 0
      %968 = vmatprep.subr.bf16.mxu0 0
      %969 = vmatpush1.bf16.msra.mxu0 0
      %970 = vmatprep.mubr.bf16.mxu0 0
      %971 = vmatmul.mubr.bf16.gmra.mrb[0].mxu0 %v930
      %v972 = vpop.f32.mrb[0].mxu0
      %v973 = vadd.f32 0.0, %v972
      %v974 = vpop.f32.mrb[0].mxu0
      %v975 = vadd.f32 0.0, %v974
      %v976 = vpop.f32.mrb[0].mxu0
      %v977 = vpop.f32.mrb[0].mxu0
      %978 = vdwg.mxu0
      %v979 = vadd.f32 %v911, %v973
      %v980 = vadd.f32 %v912, %v975
      %981 = vrot.lane.b32.xlu0 %v384, 111
      %v982 = vpop.permute.xlu0 %981
      %983 = vrot.lane.b32.xlu0 %v385, 111
      %v984 = vpop.permute.xlu0 %983
      %vm985 = vcmp.lt.s32.totalorder %v456, 111
      %v986 = vsel %vm985, %v982, %v984
      %v987 = vsel %vm985, %v984, %v982
      %s988 = scalar_lea.vmem %s1, 128
      %v989 = vld [vmem:[%s988] sm:$0xff]
      %v990 = vld [vmem:[%s988 + $0x8] sm:$0xff]
      %v991 = vmul.f32 %v986, %v989
      %v992 = vmul.f32 %v987, %v990
      %s993 = scalar_lea.vmem %s6, 32
      %v994 = vld [vmem:[%s993] sm:$0xf]
      %v995 = vpack.c.bf16 %v991, %v991
      %v996 = vpack.c.bf16 %v992, %v992
      %v998 = vsel %vm483, %v994, 0
      %v1001 = vsel %vm487, %v995, 0
      %v1004 = vsel %vm487, %v996, 0
      %1006 = vmatprep.subr.bf16.mxu0 %v1004
      %1007 = vmatpush1.bf16.msra.mxu0 %v1001
      %1008 = vmatprep.subr.bf16.mxu0 0
      %1009 = vmatpush1.bf16.msra.mxu0 0
      %1010 = vmatprep.subr.bf16.mxu0 0
      %1011 = vmatpush1.bf16.msra.mxu0 0
      %1012 = vmatprep.subr.bf16.mxu0 0
      %1013 = vmatpush1.bf16.msra.mxu0 0
      %1014 = vmatprep.subr.bf16.mxu0 0
      %1015 = vmatpush1.bf16.msra.mxu0 0
      %1016 = vmatprep.subr.bf16.mxu0 0
      %1017 = vmatpush1.bf16.msra.mxu0 0
      %1018 = vmatprep.subr.bf16.mxu0 0
      %1019 = vmatpush1.bf16.msra.mxu0 0
      %1020 = vmatprep.subr.bf16.mxu0 0
      %1021 = vmatpush1.bf16.msra.mxu0 0
      %1022 = vmatprep.subr.bf16.mxu0 0
      %1023 = vmatpush1.bf16.msra.mxu0 0
      %1024 = vmatprep.subr.bf16.mxu0 0
      %1025 = vmatpush1.bf16.msra.mxu0 0
      %1026 = vmatprep.subr.bf16.mxu0 0
      %1027 = vmatpush1.bf16.msra.mxu0 0
      %1028 = vmatprep.subr.bf16.mxu0 0
      %1029 = vmatpush1.bf16.msra.mxu0 0
      %1030 = vmatprep.subr.bf16.mxu0 0
      %1031 = vmatpush1.bf16.msra.mxu0 0
      %1032 = vmatprep.subr.bf16.mxu0 0
      %1033 = vmatpush1.bf16.msra.mxu0 0
      %1034 = vmatprep.subr.bf16.mxu0 0
      %1035 = vmatpush1.bf16.msra.mxu0 0
      %1036 = vmatprep.subr.bf16.mxu0 0
      %1037 = vmatpush1.bf16.msra.mxu0 0
      %1038 = vmatprep.mubr.bf16.mxu0 0
      %1039 = vmatmul.mubr.bf16.gmra.mrb[0].mxu0 %v998
      %v1040 = vpop.f32.mrb[0].mxu0
      %v1041 = vadd.f32 0.0, %v1040
      %v1042 = vpop.f32.mrb[0].mxu0
      %v1043 = vadd.f32 0.0, %v1042
      %v1044 = vpop.f32.mrb[0].mxu0
      %v1045 = vpop.f32.mrb[0].mxu0
      %1046 = vdwg.mxu0
      %v1047 = vadd.f32 %v979, %v1041
      %v1048 = vadd.f32 %v980, %v1043
      %v1049 = vld [vmem:[%s7] sm:$0xff]
      %1051 = vset.pattern.permute.xlu0 0
      %1052 = vperm.xlu0 %1051, %v1049
      %v1053 = vpop.permute.xlu0 %1052
      %v1055 = vadd.f32 %v1047, %v1053
      %v1056 = vadd.f32 %v1048, %v1053
      %v1057 = vxor.u32 %v1055, 2147483648
      %v1058 = vxor.u32 %v1056, 2147483648
      %v1059 = vmul.f32 %v1057, 1.442695
      %v1060 = vpow.pop %v1059
      %v1061 = vmul.f32 %v1058, 1.442695
      %v1062 = vpow.pop %v1061
      %v1063 = vadd.f32 %v1060, 1.0
      %v1064 = vadd.f32 %v1062, 1.0
      %v1065 = vrcp.pop %v1063
      %v1066 = vmul.f32 1.0, %v1065
      %v1067 = vrcp.pop %v1064
      %v1068 = vmul.f32 1.0, %v1067
      %v1069 = vmul.f32 %v1055, %v1066
      %v1070 = vmul.f32 %v1056, %v1068
      %1071 = vrot.lane.b32.xlu0 %v1069, 17
      %v1072 = vpop.permute.xlu0 %1071
      %1073 = vrot.lane.b32.xlu0 %v1070, 17
      %v1074 = vpop.permute.xlu0 %1073
      %v1075 = vsel %vm457, %v1072, %v1074
      %v1076 = vsel %vm457, %v1074, %v1072
      %v1077 = vmul.f32 %v1076, %v460
      %v1078 = vmul.f32 %v1075, %v461
      %s1079 = scalar_lea.vmem %s6, 36
      %v1080 = vld [vmem:[%s1079] sm:$0xf]
      %v1081 = vpack.c.bf16 %v1077, %v1077
      %v1082 = vpack.c.bf16 %v1078, %v1078
      %1083 = vrot.lane.b32.xlu0 %v1069, 16
      %v1084 = vpop.permute.xlu0 %1083
      %1085 = vrot.lane.b32.xlu0 %v1070, 16
      %v1086 = vpop.permute.xlu0 %1085
      %v1087 = vsel %vm471, %v1084, %v1086
      %v1088 = vsel %vm471, %v1086, %v1084
      %v1089 = vmul.f32 %v1088, %v475
      %v1090 = vmul.f32 %v1087, %v476
      %s1091 = scalar_lea.vmem %s6, 40
      %v1092 = vld [vmem:[%s1091] sm:$0xf]
      %v1093 = vpack.c.bf16 %v1089, %v1089
      %v1094 = vpack.c.bf16 %v1090, %v1090
      %v1096 = vsel %vm483, %v1092, 0
      %v1099 = vsel %vm487, %v1093, 0
      %v1102 = vsel %vm487, %v1094, 0
      %1104 = vmatprep.subr.bf16.mxu0 %v1102
      %1105 = vmatpush1.bf16.msra.mxu0 %v1099
      %1106 = vmatprep.subr.bf16.mxu0 0
      %1107 = vmatpush1.bf16.msra.mxu0 0
      %1108 = vmatprep.subr.bf16.mxu0 0
      %1109 = vmatpush1.bf16.msra.mxu0 0
      %1110 = vmatprep.subr.bf16.mxu0 0
      %1111 = vmatpush1.bf16.msra.mxu0 0
      %1112 = vmatprep.subr.bf16.mxu0 0
      %1113 = vmatpush1.bf16.msra.mxu0 0
      %1114 = vmatprep.subr.bf16.mxu0 0
      %1115 = vmatpush1.bf16.msra.mxu0 0
      %1116 = vmatprep.subr.bf16.mxu0 0
      %1117 = vmatpush1.bf16.msra.mxu0 0
      %1118 = vmatprep.subr.bf16.mxu0 0
      %1119 = vmatpush1.bf16.msra.mxu0 0
      %1120 = vmatprep.subr.bf16.mxu0 0
      %1121 = vmatpush1.bf16.msra.mxu0 0
      %1122 = vmatprep.subr.bf16.mxu0 0
      %1123 = vmatpush1.bf16.msra.mxu0 0
      %1124 = vmatprep.subr.bf16.mxu0 0
      %1125 = vmatpush1.bf16.msra.mxu0 0
      %1126 = vmatprep.subr.bf16.mxu0 0
      %1127 = vmatpush1.bf16.msra.mxu0 0
      %1128 = vmatprep.subr.bf16.mxu0 0
      %1129 = vmatpush1.bf16.msra.mxu0 0
      %1130 = vmatprep.subr.bf16.mxu0 0
      %1131 = vmatpush1.bf16.msra.mxu0 0
      %1132 = vmatprep.subr.bf16.mxu0 0
      %1133 = vmatpush1.bf16.msra.mxu0 0
      %1134 = vmatprep.subr.bf16.mxu0 0
      %1135 = vmatpush1.bf16.msra.mxu0 0
      %1136 = vmatprep.mubr.bf16.mxu0 0
      %1137 = vmatmul.mubr.bf16.gmra.mrb[0].mxu0 %v1096
      %v1138 = vpop.f32.mrb[0].mxu0
      %v1139 = vadd.f32 0.0, %v1138
      %v1140 = vpop.f32.mrb[0].mxu0
      %v1141 = vadd.f32 0.0, %v1140
      %v1142 = vpop.f32.mrb[0].mxu0
      %v1143 = vpop.f32.mrb[0].mxu0
      %1144 = vdwg.mxu0
      %v1146 = vsel %vm483, %v1080, 0
      %v1149 = vsel %vm487, %v1081, 0
      %v1152 = vsel %vm487, %v1082, 0
      %1154 = vmatprep.subr.bf16.mxu0 %v1152
      %1155 = vmatpush1.bf16.msra.mxu0 %v1149
      %1156 = vmatprep.subr.bf16.mxu0 0
      %1157 = vmatpush1.bf16.msra.mxu0 0
      %1158 = vmatprep.subr.bf16.mxu0 0
      %1159 = vmatpush1.bf16.msra.mxu0 0
      %1160 = vmatprep.subr.bf16.mxu0 0
      %1161 = vmatpush1.bf16.msra.mxu0 0
      %1162 = vmatprep.subr.bf16.mxu0 0
      %1163 = vmatpush1.bf16.msra.mxu0 0
      %1164 = vmatprep.subr.bf16.mxu0 0
      %1165 = vmatpush1.bf16.msra.mxu0 0
      %1166 = vmatprep.subr.bf16.mxu0 0
      %1167 = vmatpush1.bf16.msra.mxu0 0
      %1168 = vmatprep.subr.bf16.mxu0 0
      %1169 = vmatpush1.bf16.msra.mxu0 0
      %1170 = vmatprep.subr.bf16.mxu0 0
      %1171 = vmatpush1.bf16.msra.mxu0 0
      %1172 = vmatprep.subr.bf16.mxu0 0
      %1173 = vmatpush1.bf16.msra.mxu0 0
      %1174 = vmatprep.subr.bf16.mxu0 0
      %1175 = vmatpush1.bf16.msra.mxu0 0
      %1176 = vmatprep.subr.bf16.mxu0 0
      %1177 = vmatpush1.bf16.msra.mxu0 0
      %1178 = vmatprep.subr.bf16.mxu0 0
      %1179 = vmatpush1.bf16.msra.mxu0 0
      %1180 = vmatprep.subr.bf16.mxu0 0
      %1181 = vmatpush1.bf16.msra.mxu0 0
      %1182 = vmatprep.subr.bf16.mxu0 0
      %1183 = vmatpush1.bf16.msra.mxu0 0
      %1184 = vmatprep.subr.bf16.mxu0 0
      %1185 = vmatpush1.bf16.msra.mxu0 0
      %1186 = vmatprep.mubr.bf16.mxu0 0
      %1187 = vmatmul.mubr.bf16.gmra.mrb[0].mxu0 %v1146
      %v1188 = vpop.f32.mrb[0].mxu0
      %v1189 = vadd.f32 %v1139, %v1188
      %v1190 = vpop.f32.mrb[0].mxu0
      %v1191 = vadd.f32 %v1141, %v1190
      %v1192 = vpop.f32.mrb[0].mxu0
      %v1193 = vpop.f32.mrb[0].mxu0
      %1194 = vdwg.mxu0
      %1195 = vrot.lane.b32.xlu0 %v1069, 15
      %v1196 = vpop.permute.xlu0 %1195
      %1197 = vrot.lane.b32.xlu0 %v1070, 15
      %v1198 = vpop.permute.xlu0 %1197
      %v1199 = vsel %vm589, %v1196, %v1198
      %v1200 = vsel %vm589, %v1198, %v1196
      %v1201 = vmul.f32 %v1200, %v593
      %v1202 = vmul.f32 %v1199, %v594
      %s1203 = scalar_lea.vmem %s6, 44
      %v1204 = vld [vmem:[%s1203] sm:$0xf]
      %v1205 = vpack.c.bf16 %v1201, %v1201
      %v1206 = vpack.c.bf16 %v1202, %v1202
      %v1208 = vsel %vm483, %v1204, 0
      %v1211 = vsel %vm487, %v1205, 0
      %v1214 = vsel %vm487, %v1206, 0
      %1216 = vmatprep.subr.bf16.mxu0 %v1214
      %1217 = vmatpush1.bf16.msra.mxu0 %v1211
      %1218 = vmatprep.subr.bf16.mxu0 0
      %1219 = vmatpush1.bf16.msra.mxu0 0
      %1220 = vmatprep.subr.bf16.mxu0 0
      %1221 = vmatpush1.bf16.msra.mxu0 0
      %1222 = vmatprep.subr.bf16.mxu0 0
      %1223 = vmatpush1.bf16.msra.mxu0 0
      %1224 = vmatprep.subr.bf16.mxu0 0
      %1225 = vmatpush1.bf16.msra.mxu0 0
      %1226 = vmatprep.subr.bf16.mxu0 0
      %1227 = vmatpush1.bf16.msra.mxu0 0
      %1228 = vmatprep.subr.bf16.mxu0 0
      %1229 = vmatpush1.bf16.msra.mxu0 0
      %1230 = vmatprep.subr.bf16.mxu0 0
      %1231 = vmatpush1.bf16.msra.mxu0 0
      %1232 = vmatprep.subr.bf16.mxu0 0
      %1233 = vmatpush1.bf16.msra.mxu0 0
      %1234 = vmatprep.subr.bf16.mxu0 0
      %1235 = vmatpush1.bf16.msra.mxu0 0
      %1236 = vmatprep.subr.bf16.mxu0 0
      %1237 = vmatpush1.bf16.msra.mxu0 0
      %1238 = vmatprep.subr.bf16.mxu0 0
      %1239 = vmatpush1.bf16.msra.mxu0 0
      %1240 = vmatprep.subr.bf16.mxu0 0
      %1241 = vmatpush1.bf16.msra.mxu0 0
      %1242 = vmatprep.subr.bf16.mxu0 0
      %1243 = vmatpush1.bf16.msra.mxu0 0
      %1244 = vmatprep.subr.bf16.mxu0 0
      %1245 = vmatpush1.bf16.msra.mxu0 0
      %1246 = vmatprep.subr.bf16.mxu0 0
      %1247 = vmatpush1.bf16.msra.mxu0 0
      %1248 = vmatprep.mubr.bf16.mxu0 0
      %1249 = vmatmul.mubr.bf16.gmra.mrb[0].mxu0 %v1208
      %v1250 = vpop.f32.mrb[0].mxu0
      %v1251 = vadd.f32 0.0, %v1250
      %v1252 = vpop.f32.mrb[0].mxu0
      %v1253 = vadd.f32 0.0, %v1252
      %v1254 = vpop.f32.mrb[0].mxu0
      %v1255 = vpop.f32.mrb[0].mxu0
      %1256 = vdwg.mxu0
      %v1257 = vadd.f32 %v1189, %v1251
      %v1258 = vadd.f32 %v1191, %v1253
      %1259 = vrot.lane.b32.xlu0 %v1069, 1
      %v1260 = vpop.permute.xlu0 %1259
      %1261 = vrot.lane.b32.xlu0 %v1070, 1
      %v1262 = vpop.permute.xlu0 %1261
      %v1263 = vsel %vm657, %v1260, %v1262
      %v1264 = vsel %vm657, %v1262, %v1260
      %v1265 = vmul.f32 %v1264, %v661
      %v1266 = vmul.f32 %v1263, %v662
      %s1267 = scalar_lea.vmem %s6, 48
      %v1268 = vld [vmem:[%s1267] sm:$0xf]
      %v1269 = vpack.c.bf16 %v1265, %v1265
      %v1270 = vpack.c.bf16 %v1266, %v1266
      %v1272 = vsel %vm483, %v1268, 0
      %v1275 = vsel %vm487, %v1269, 0
      %v1278 = vsel %vm487, %v1270, 0
      %1280 = vmatprep.subr.bf16.mxu0 %v1278
      %1281 = vmatpush1.bf16.msra.mxu0 %v1275
      %1282 = vmatprep.subr.bf16.mxu0 0
      %1283 = vmatpush1.bf16.msra.mxu0 0
      %1284 = vmatprep.subr.bf16.mxu0 0
      %1285 = vmatpush1.bf16.msra.mxu0 0
      %1286 = vmatprep.subr.bf16.mxu0 0
      %1287 = vmatpush1.bf16.msra.mxu0 0
      %1288 = vmatprep.subr.bf16.mxu0 0
      %1289 = vmatpush1.bf16.msra.mxu0 0
      %1290 = vmatprep.subr.bf16.mxu0 0
      %1291 = vmatpush1.bf16.msra.mxu0 0
      %1292 = vmatprep.subr.bf16.mxu0 0
      %1293 = vmatpush1.bf16.msra.mxu0 0
      %1294 = vmatprep.subr.bf16.mxu0 0
      %1295 = vmatpush1.bf16.msra.mxu0 0
      %1296 = vmatprep.subr.bf16.mxu0 0
      %1297 = vmatpush1.bf16.msra.mxu0 0
      %1298 = vmatprep.subr.bf16.mxu0 0
      %1299 = vmatpush1.bf16.msra.mxu0 0
      %1300 = vmatprep.subr.bf16.mxu0 0
      %1301 = vmatpush1.bf16.msra.mxu0 0
      %1302 = vmatprep.subr.bf16.mxu0 0
      %1303 = vmatpush1.bf16.msra.mxu0 0
      %1304 = vmatprep.subr.bf16.mxu0 0
      %1305 = vmatpush1.bf16.msra.mxu0 0
      %1306 = vmatprep.subr.bf16.mxu0 0
      %1307 = vmatpush1.bf16.msra.mxu0 0
      %1308 = vmatprep.subr.bf16.mxu0 0
      %1309 = vmatpush1.bf16.msra.mxu0 0
      %1310 = vmatprep.subr.bf16.mxu0 0
      %1311 = vmatpush1.bf16.msra.mxu0 0
      %1312 = vmatprep.mubr.bf16.mxu0 0
      %1313 = vmatmul.mubr.bf16.gmra.mrb[0].mxu0 %v1272
      %v1314 = vpop.f32.mrb[0].mxu0
      %v1315 = vadd.f32 0.0, %v1314
      %v1316 = vpop.f32.mrb[0].mxu0
      %v1317 = vadd.f32 0.0, %v1316
      %v1318 = vpop.f32.mrb[0].mxu0
      %v1319 = vpop.f32.mrb[0].mxu0
      %1320 = vdwg.mxu0
      %v1321 = vadd.f32 %v1257, %v1315
      %v1322 = vadd.f32 %v1258, %v1317
      %s1323 = scalar_lea.vmem %s6, 52
      %v1324 = vld [vmem:[%s1323] sm:$0xf]
      %v1325 = vpack.c.bf16 %v1069, %v1069
      %v1326 = vpack.c.bf16 %v1070, %v1070
      %v1328 = vsel %vm483, %v1324, 0
      %v1331 = vsel %vm487, %v1325, 0
      %v1334 = vsel %vm487, %v1326, 0
      %1336 = vmatprep.subr.bf16.mxu0 %v1334
      %1337 = vmatpush1.bf16.msra.mxu0 %v1331
      %1338 = vmatprep.subr.bf16.mxu0 0
      %1339 = vmatpush1.bf16.msra.mxu0 0
      %1340 = vmatprep.subr.bf16.mxu0 0
      %1341 = vmatpush1.bf16.msra.mxu0 0
      %1342 = vmatprep.subr.bf16.mxu0 0
      %1343 = vmatpush1.bf16.msra.mxu0 0
      %1344 = vmatprep.subr.bf16.mxu0 0
      %1345 = vmatpush1.bf16.msra.mxu0 0
      %1346 = vmatprep.subr.bf16.mxu0 0
      %1347 = vmatpush1.bf16.msra.mxu0 0
      %1348 = vmatprep.subr.bf16.mxu0 0
      %1349 = vmatpush1.bf16.msra.mxu0 0
      %1350 = vmatprep.subr.bf16.mxu0 0
      %1351 = vmatpush1.bf16.msra.mxu0 0
      %1352 = vmatprep.subr.bf16.mxu0 0
      %1353 = vmatpush1.bf16.msra.mxu0 0
      %1354 = vmatprep.subr.bf16.mxu0 0
      %1355 = vmatpush1.bf16.msra.mxu0 0
      %1356 = vmatprep.subr.bf16.mxu0 0
      %1357 = vmatpush1.bf16.msra.mxu0 0
      %1358 = vmatprep.subr.bf16.mxu0 0
      %1359 = vmatpush1.bf16.msra.mxu0 0
      %1360 = vmatprep.subr.bf16.mxu0 0
      %1361 = vmatpush1.bf16.msra.mxu0 0
      %1362 = vmatprep.subr.bf16.mxu0 0
      %1363 = vmatpush1.bf16.msra.mxu0 0
      %1364 = vmatprep.subr.bf16.mxu0 0
      %1365 = vmatpush1.bf16.msra.mxu0 0
      %1366 = vmatprep.subr.bf16.mxu0 0
      %1367 = vmatpush1.bf16.msra.mxu0 0
      %1368 = vmatprep.mubr.bf16.mxu0 0
      %1369 = vmatmul.mubr.bf16.gmra.mrb[0].mxu0 %v1328
      %v1370 = vpop.f32.mrb[0].mxu0
      %v1371 = vadd.f32 0.0, %v1370
      %v1372 = vpop.f32.mrb[0].mxu0
      %v1373 = vadd.f32 0.0, %v1372
      %v1374 = vpop.f32.mrb[0].mxu0
      %v1375 = vpop.f32.mrb[0].mxu0
      %1376 = vdwg.mxu0
      %v1377 = vadd.f32 %v1321, %v1371
      %v1378 = vadd.f32 %v1322, %v1373
      %1379 = vrot.lane.b32.xlu0 %v1069, 127
      %v1380 = vpop.permute.xlu0 %1379
      %1381 = vrot.lane.b32.xlu0 %v1070, 127
      %v1382 = vpop.permute.xlu0 %1381
      %v1383 = vsel %vm781, %v1380, %v1382
      %v1384 = vsel %vm781, %v1382, %v1380
      %v1385 = vmul.f32 %v1383, %v785
      %v1386 = vmul.f32 %v1384, %v786
      %s1387 = scalar_lea.vmem %s6, 56
      %v1388 = vld [vmem:[%s1387] sm:$0xf]
      %v1389 = vpack.c.bf16 %v1385, %v1385
      %v1390 = vpack.c.bf16 %v1386, %v1386
      %v1392 = vsel %vm483, %v1388, 0
      %v1395 = vsel %vm487, %v1389, 0
      %v1398 = vsel %vm487, %v1390, 0
      %1400 = vmatprep.subr.bf16.mxu0 %v1398
      %1401 = vmatpush1.bf16.msra.mxu0 %v1395
      %1402 = vmatprep.subr.bf16.mxu0 0
      %1403 = vmatpush1.bf16.msra.mxu0 0
      %1404 = vmatprep.subr.bf16.mxu0 0
      %1405 = vmatpush1.bf16.msra.mxu0 0
      %1406 = vmatprep.subr.bf16.mxu0 0
      %1407 = vmatpush1.bf16.msra.mxu0 0
      %1408 = vmatprep.subr.bf16.mxu0 0
      %1409 = vmatpush1.bf16.msra.mxu0 0
      %1410 = vmatprep.subr.bf16.mxu0 0
      %1411 = vmatpush1.bf16.msra.mxu0 0
      %1412 = vmatprep.subr.bf16.mxu0 0
      %1413 = vmatpush1.bf16.msra.mxu0 0
      %1414 = vmatprep.subr.bf16.mxu0 0
      %1415 = vmatpush1.bf16.msra.mxu0 0
      %1416 = vmatprep.subr.bf16.mxu0 0
      %1417 = vmatpush1.bf16.msra.mxu0 0
      %1418 = vmatprep.subr.bf16.mxu0 0
      %1419 = vmatpush1.bf16.msra.mxu0 0
      %1420 = vmatprep.subr.bf16.mxu0 0
      %1421 = vmatpush1.bf16.msra.mxu0 0
      %1422 = vmatprep.subr.bf16.mxu0 0
      %1423 = vmatpush1.bf16.msra.mxu0 0
      %1424 = vmatprep.subr.bf16.mxu0 0
      %1425 = vmatpush1.bf16.msra.mxu0 0
      %1426 = vmatprep.subr.bf16.mxu0 0
      %1427 = vmatpush1.bf16.msra.mxu0 0
      %1428 = vmatprep.subr.bf16.mxu0 0
      %1429 = vmatpush1.bf16.msra.mxu0 0
      %1430 = vmatprep.subr.bf16.mxu0 0
      %1431 = vmatpush1.bf16.msra.mxu0 0
      %1432 = vmatprep.mubr.bf16.mxu0 0
      %1433 = vmatmul.mubr.bf16.gmra.mrb[0].mxu0 %v1392
      %v1434 = vpop.f32.mrb[0].mxu0
      %v1435 = vadd.f32 0.0, %v1434
      %v1436 = vpop.f32.mrb[0].mxu0
      %v1437 = vadd.f32 0.0, %v1436
      %v1438 = vpop.f32.mrb[0].mxu0
      %v1439 = vpop.f32.mrb[0].mxu0
      %1440 = vdwg.mxu0
      %v1441 = vadd.f32 %v1377, %v1435
      %v1442 = vadd.f32 %v1378, %v1437
      %1443 = vrot.lane.b32.xlu0 %v1069, 113
      %v1444 = vpop.permute.xlu0 %1443
      %1445 = vrot.lane.b32.xlu0 %v1070, 113
      %v1446 = vpop.permute.xlu0 %1445
      %v1447 = vsel %vm849, %v1444, %v1446
      %v1448 = vsel %vm849, %v1446, %v1444
      %v1449 = vmul.f32 %v1447, %v853
      %v1450 = vmul.f32 %v1448, %v854
      %s1451 = scalar_lea.vmem %s6, 60
      %v1452 = vld [vmem:[%s1451] sm:$0xf]
      %v1453 = vpack.c.bf16 %v1449, %v1449
      %v1454 = vpack.c.bf16 %v1450, %v1450
      %v1456 = vsel %vm483, %v1452, 0
      %v1459 = vsel %vm487, %v1453, 0
      %v1462 = vsel %vm487, %v1454, 0
      %1464 = vmatprep.subr.bf16.mxu0 %v1462
      %1465 = vmatpush1.bf16.msra.mxu0 %v1459
      %1466 = vmatprep.subr.bf16.mxu0 0
      %1467 = vmatpush1.bf16.msra.mxu0 0
      %1468 = vmatprep.subr.bf16.mxu0 0
      %1469 = vmatpush1.bf16.msra.mxu0 0
      %1470 = vmatprep.subr.bf16.mxu0 0
      %1471 = vmatpush1.bf16.msra.mxu0 0
      %1472 = vmatprep.subr.bf16.mxu0 0
      %1473 = vmatpush1.bf16.msra.mxu0 0
      %1474 = vmatprep.subr.bf16.mxu0 0
      %1475 = vmatpush1.bf16.msra.mxu0 0
      %1476 = vmatprep.subr.bf16.mxu0 0
      %1477 = vmatpush1.bf16.msra.mxu0 0
      %1478 = vmatprep.subr.bf16.mxu0 0
      %1479 = vmatpush1.bf16.msra.mxu0 0
      %1480 = vmatprep.subr.bf16.mxu0 0
      %1481 = vmatpush1.bf16.msra.mxu0 0
      %1482 = vmatprep.subr.bf16.mxu0 0
      %1483 = vmatpush1.bf16.msra.mxu0 0
      %1484 = vmatprep.subr.bf16.mxu0 0
      %1485 = vmatpush1.bf16.msra.mxu0 0
      %1486 = vmatprep.subr.bf16.mxu0 0
      %1487 = vmatpush1.bf16.msra.mxu0 0
      %1488 = vmatprep.subr.bf16.mxu0 0
      %1489 = vmatpush1.bf16.msra.mxu0 0
      %1490 = vmatprep.subr.bf16.mxu0 0
      %1491 = vmatpush1.bf16.msra.mxu0 0
      %1492 = vmatprep.subr.bf16.mxu0 0
      %1493 = vmatpush1.bf16.msra.mxu0 0
      %1494 = vmatprep.subr.bf16.mxu0 0
      %1495 = vmatpush1.bf16.msra.mxu0 0
      %1496 = vmatprep.mubr.bf16.mxu0 0
      %1497 = vmatmul.mubr.bf16.gmra.mrb[0].mxu0 %v1456
      %v1498 = vpop.f32.mrb[0].mxu0
      %v1499 = vadd.f32 0.0, %v1498
      %v1500 = vpop.f32.mrb[0].mxu0
      %v1501 = vadd.f32 0.0, %v1500
      %v1502 = vpop.f32.mrb[0].mxu0
      %v1503 = vpop.f32.mrb[0].mxu0
      %1504 = vdwg.mxu0
      %v1505 = vadd.f32 %v1441, %v1499
      %v1506 = vadd.f32 %v1442, %v1501
      %1507 = vrot.lane.b32.xlu0 %v1069, 112
      %v1508 = vpop.permute.xlu0 %1507
      %1509 = vrot.lane.b32.xlu0 %v1070, 112
      %v1510 = vpop.permute.xlu0 %1509
      %v1511 = vsel %vm917, %v1508, %v1510
      %v1512 = vsel %vm917, %v1510, %v1508
      %v1513 = vmul.f32 %v1511, %v921
      %v1514 = vmul.f32 %v1512, %v922
      %s1515 = scalar_lea.vmem %s6, 64
      %v1516 = vld [vmem:[%s1515] sm:$0xf]
      %v1517 = vpack.c.bf16 %v1513, %v1513
      %v1518 = vpack.c.bf16 %v1514, %v1514
      %v1520 = vsel %vm483, %v1516, 0
      %v1523 = vsel %vm487, %v1517, 0
      %v1526 = vsel %vm487, %v1518, 0
      %1528 = vmatprep.subr.bf16.mxu0 %v1526
      %1529 = vmatpush1.bf16.msra.mxu0 %v1523
      %1530 = vmatprep.subr.bf16.mxu0 0
      %1531 = vmatpush1.bf16.msra.mxu0 0
      %1532 = vmatprep.subr.bf16.mxu0 0
      %1533 = vmatpush1.bf16.msra.mxu0 0
      %1534 = vmatprep.subr.bf16.mxu0 0
      %1535 = vmatpush1.bf16.msra.mxu0 0
      %1536 = vmatprep.subr.bf16.mxu0 0
      %1537 = vmatpush1.bf16.msra.mxu0 0
      %1538 = vmatprep.subr.bf16.mxu0 0
      %1539 = vmatpush1.bf16.msra.mxu0 0
      %1540 = vmatprep.subr.bf16.mxu0 0
      %1541 = vmatpush1.bf16.msra.mxu0 0
      %1542 = vmatprep.subr.bf16.mxu0 0
      %1543 = vmatpush1.bf16.msra.mxu0 0
      %1544 = vmatprep.subr.bf16.mxu0 0
      %1545 = vmatpush1.bf16.msra.mxu0 0
      %1546 = vmatprep.subr.bf16.mxu0 0
      %1547 = vmatpush1.bf16.msra.mxu0 0
      %1548 = vmatprep.subr.bf16.mxu0 0
      %1549 = vmatpush1.bf16.msra.mxu0 0
      %1550 = vmatprep.subr.bf16.mxu0 0
      %1551 = vmatpush1.bf16.msra.mxu0 0
      %1552 = vmatprep.subr.bf16.mxu0 0
      %1553 = vmatpush1.bf16.msra.mxu0 0
      %1554 = vmatprep.subr.bf16.mxu0 0
      %1555 = vmatpush1.bf16.msra.mxu0 0
      %1556 = vmatprep.subr.bf16.mxu0 0
      %1557 = vmatpush1.bf16.msra.mxu0 0
      %1558 = vmatprep.subr.bf16.mxu0 0
      %1559 = vmatpush1.bf16.msra.mxu0 0
      %1560 = vmatprep.mubr.bf16.mxu0 0
      %1561 = vmatmul.mubr.bf16.gmra.mrb[0].mxu0 %v1520
      %v1562 = vpop.f32.mrb[0].mxu0
      %v1563 = vadd.f32 0.0, %v1562
      %v1564 = vpop.f32.mrb[0].mxu0
      %v1565 = vadd.f32 0.0, %v1564
      %v1566 = vpop.f32.mrb[0].mxu0
      %v1567 = vpop.f32.mrb[0].mxu0
      %1568 = vdwg.mxu0
      %v1569 = vadd.f32 %v1505, %v1563
      %v1570 = vadd.f32 %v1506, %v1565
      %1571 = vrot.lane.b32.xlu0 %v1069, 111
      %v1572 = vpop.permute.xlu0 %1571
      %1573 = vrot.lane.b32.xlu0 %v1070, 111
      %v1574 = vpop.permute.xlu0 %1573
      %v1575 = vsel %vm985, %v1572, %v1574
      %v1576 = vsel %vm985, %v1574, %v1572
      %v1577 = vmul.f32 %v1575, %v989
      %v1578 = vmul.f32 %v1576, %v990
      %s1579 = scalar_lea.vmem %s6, 68
      %v1580 = vld [vmem:[%s1579] sm:$0xf]
      %v1581 = vpack.c.bf16 %v1577, %v1577
      %v1582 = vpack.c.bf16 %v1578, %v1578
      %v1584 = vsel %vm483, %v1580, 0
      %v1587 = vsel %vm487, %v1581, 0
      %v1590 = vsel %vm487, %v1582, 0
      %1592 = vmatprep.subr.bf16.mxu0 %v1590
      %1593 = vmatpush1.bf16.msra.mxu0 %v1587
      %1594 = vmatprep.subr.bf16.mxu0 0
      %1595 = vmatpush1.bf16.msra.mxu0 0
      %1596 = vmatprep.subr.bf16.mxu0 0
      %1597 = vmatpush1.bf16.msra.mxu0 0
      %1598 = vmatprep.subr.bf16.mxu0 0
      %1599 = vmatpush1.bf16.msra.mxu0 0
      %1600 = vmatprep.subr.bf16.mxu0 0
      %1601 = vmatpush1.bf16.msra.mxu0 0
      %1602 = vmatprep.subr.bf16.mxu0 0
      %1603 = vmatpush1.bf16.msra.mxu0 0
      %1604 = vmatprep.subr.bf16.mxu0 0
      %1605 = vmatpush1.bf16.msra.mxu0 0
      %1606 = vmatprep.subr.bf16.mxu0 0
      %1607 = vmatpush1.bf16.msra.mxu0 0
      %1608 = vmatprep.subr.bf16.mxu0 0
      %1609 = vmatpush1.bf16.msra.mxu0 0
      %1610 = vmatprep.subr.bf16.mxu0 0
      %1611 = vmatpush1.bf16.msra.mxu0 0
      %1612 = vmatprep.subr.bf16.mxu0 0
      %1613 = vmatpush1.bf16.msra.mxu0 0
      %1614 = vmatprep.subr.bf16.mxu0 0
      %1615 = vmatpush1.bf16.msra.mxu0 0
      %1616 = vmatprep.subr.bf16.mxu0 0
      %1617 = vmatpush1.bf16.msra.mxu0 0
      %1618 = vmatprep.subr.bf16.mxu0 0
      %1619 = vmatpush1.bf16.msra.mxu0 0
      %1620 = vmatprep.subr.bf16.mxu0 0
      %1621 = vmatpush1.bf16.msra.mxu0 0
      %1622 = vmatprep.subr.bf16.mxu0 0
      %1623 = vmatpush1.bf16.msra.mxu0 0
      %1624 = vmatprep.mubr.bf16.mxu0 0
      %1625 = vmatmul.mubr.bf16.gmra.mrb[0].mxu0 %v1584
      %v1626 = vpop.f32.mrb[0].mxu0
      %v1627 = vadd.f32 0.0, %v1626
      %v1628 = vpop.f32.mrb[0].mxu0
      %v1629 = vadd.f32 0.0, %v1628
      %v1630 = vpop.f32.mrb[0].mxu0
      %v1631 = vpop.f32.mrb[0].mxu0
      %1632 = vdwg.mxu0
      %v1633 = vadd.f32 %v1569, %v1627
      %v1634 = vadd.f32 %v1570, %v1629
      %s1635 = scalar_lea.vmem %s7, 8
      %v1636 = vld [vmem:[%s1635] sm:$0xff]
      %1638 = vset.pattern.permute.xlu0 0
      %1639 = vperm.xlu0 %1638, %v1636
      %v1640 = vpop.permute.xlu0 %1639
      %v1642 = vadd.f32 %v1633, %v1640
      %v1643 = vadd.f32 %v1634, %v1640
      %v1644 = vxor.u32 %v1642, 2147483648
      %v1645 = vxor.u32 %v1643, 2147483648
      %v1646 = vmul.f32 %v1644, 1.442695
      %v1647 = vpow.pop %v1646
      %v1648 = vmul.f32 %v1645, 1.442695
      %v1649 = vpow.pop %v1648
      %v1650 = vadd.f32 %v1647, 1.0
      %v1651 = vadd.f32 %v1649, 1.0
      %v1652 = vrcp.pop %v1650
      %v1653 = vmul.f32 1.0, %v1652
      %v1654 = vrcp.pop %v1651
      %v1655 = vmul.f32 1.0, %v1654
      %v1656 = vmul.f32 %v1642, %v1653
      %v1657 = vmul.f32 %v1643, %v1655
      %1658 = vrot.lane.b32.xlu0 %v1656, 17
      %v1659 = vpop.permute.xlu0 %1658
      %1660 = vrot.lane.b32.xlu0 %v1657, 17
      %v1661 = vpop.permute.xlu0 %1660
      %v1662 = vsel %vm457, %v1659, %v1661
      %v1663 = vsel %vm457, %v1661, %v1659
      %v1664 = vmul.f32 %v1663, %v460
      %v1665 = vmul.f32 %v1662, %v461
      %s1666 = scalar_lea.vmem %s6, 72
      %v1667 = vld [vmem:[%s1666] sm:$0xf]
      %v1668 = vpack.c.bf16 %v1664, %v1664
      %v1669 = vpack.c.bf16 %v1665, %v1665
      %1670 = vrot.lane.b32.xlu0 %v1656, 16
      %v1671 = vpop.permute.xlu0 %1670
      %1672 = vrot.lane.b32.xlu0 %v1657, 16
      %v1673 = vpop.permute.xlu0 %1672
      %v1674 = vsel %vm471, %v1671, %v1673
      %v1675 = vsel %vm471, %v1673, %v1671
      %v1676 = vmul.f32 %v1675, %v475
      %v1677 = vmul.f32 %v1674, %v476
      %s1678 = scalar_lea.vmem %s6, 76
      %v1679 = vld [vmem:[%s1678] sm:$0xf]
      %v1680 = vpack.c.bf16 %v1676, %v1676
      %v1681 = vpack.c.bf16 %v1677, %v1677
      %v1683 = vsel %vm483, %v1679, 0
      %v1686 = vsel %vm487, %v1680, 0
      %v1689 = vsel %vm487, %v1681, 0
      %1691 = vmatprep.subr.bf16.mxu0 %v1689
      %1692 = vmatpush1.bf16.msra.mxu0 %v1686
      %1693 = vmatprep.subr.bf16.mxu0 0
      %1694 = vmatpush1.bf16.msra.mxu0 0
      %1695 = vmatprep.subr.bf16.mxu0 0
      %1696 = vmatpush1.bf16.msra.mxu0 0
      %1697 = vmatprep.subr.bf16.mxu0 0
      %1698 = vmatpush1.bf16.msra.mxu0 0
      %1699 = vmatprep.subr.bf16.mxu0 0
      %1700 = vmatpush1.bf16.msra.mxu0 0
      %1701 = vmatprep.subr.bf16.mxu0 0
      %1702 = vmatpush1.bf16.msra.mxu0 0
      %1703 = vmatprep.subr.bf16.mxu0 0
      %1704 = vmatpush1.bf16.msra.mxu0 0
      %1705 = vmatprep.subr.bf16.mxu0 0
      %1706 = vmatpush1.bf16.msra.mxu0 0
      %1707 = vmatprep.subr.bf16.mxu0 0
      %1708 = vmatpush1.bf16.msra.mxu0 0
      %1709 = vmatprep.subr.bf16.mxu0 0
      %1710 = vmatpush1.bf16.msra.mxu0 0
      %1711 = vmatprep.subr.bf16.mxu0 0
      %1712 = vmatpush1.bf16.msra.mxu0 0
      %1713 = vmatprep.subr.bf16.mxu0 0
      %1714 = vmatpush1.bf16.msra.mxu0 0
      %1715 = vmatprep.subr.bf16.mxu0 0
      %1716 = vmatpush1.bf16.msra.mxu0 0
      %1717 = vmatprep.subr.bf16.mxu0 0
      %1718 = vmatpush1.bf16.msra.mxu0 0
      %1719 = vmatprep.subr.bf16.mxu0 0
      %1720 = vmatpush1.bf16.msra.mxu0 0
      %1721 = vmatprep.subr.bf16.mxu0 0
      %1722 = vmatpush1.bf16.msra.mxu0 0
      %1723 = vmatprep.mubr.bf16.mxu0 0
      %1724 = vmatmul.mubr.bf16.gmra.mrb[0].mxu0 %v1683
      %v1725 = vpop.f32.mrb[0].mxu0
      %v1726 = vadd.f32 0.0, %v1725
      %v1727 = vpop.f32.mrb[0].mxu0
      %v1728 = vadd.f32 0.0, %v1727
      %v1729 = vpop.f32.mrb[0].mxu0
      %v1730 = vpop.f32.mrb[0].mxu0
      %1731 = vdwg.mxu0
      %v1733 = vsel %vm483, %v1667, 0
      %v1736 = vsel %vm487, %v1668, 0
      %v1739 = vsel %vm487, %v1669, 0
      %1741 = vmatprep.subr.bf16.mxu0 %v1739
      %1742 = vmatpush1.bf16.msra.mxu0 %v1736
      %1743 = vmatprep.subr.bf16.mxu0 0
      %1744 = vmatpush1.bf16.msra.mxu0 0
      %1745 = vmatprep.subr.bf16.mxu0 0
      %1746 = vmatpush1.bf16.msra.mxu0 0
      %1747 = vmatprep.subr.bf16.mxu0 0
      %1748 = vmatpush1.bf16.msra.mxu0 0
      %1749 = vmatprep.subr.bf16.mxu0 0
      %1750 = vmatpush1.bf16.msra.mxu0 0
      %1751 = vmatprep.subr.bf16.mxu0 0
      %1752 = vmatpush1.bf16.msra.mxu0 0
      %1753 = vmatprep.subr.bf16.mxu0 0
      %1754 = vmatpush1.bf16.msra.mxu0 0
      %1755 = vmatprep.subr.bf16.mxu0 0
      %1756 = vmatpush1.bf16.msra.mxu0 0
      %1757 = vmatprep.subr.bf16.mxu0 0
      %1758 = vmatpush1.bf16.msra.mxu0 0
      %1759 = vmatprep.subr.bf16.mxu0 0
      %1760 = vmatpush1.bf16.msra.mxu0 0
      %1761 = vmatprep.subr.bf16.mxu0 0
      %1762 = vmatpush1.bf16.msra.mxu0 0
      %1763 = vmatprep.subr.bf16.mxu0 0
      %1764 = vmatpush1.bf16.msra.mxu0 0
      %1765 = vmatprep.subr.bf16.mxu0 0
      %1766 = vmatpush1.bf16.msra.mxu0 0
      %1767 = vmatprep.subr.bf16.mxu0 0
      %1768 = vmatpush1.bf16.msra.mxu0 0
      %1769 = vmatprep.subr.bf16.mxu0 0
      %1770 = vmatpush1.bf16.msra.mxu0 0
      %1771 = vmatprep.subr.bf16.mxu0 0
      %1772 = vmatpush1.bf16.msra.mxu0 0
      %1773 = vmatprep.mubr.bf16.mxu0 0
      %1774 = vmatmul.mubr.bf16.gmra.mrb[0].mxu0 %v1733
      %v1775 = vpop.f32.mrb[0].mxu0
      %v1776 = vadd.f32 %v1726, %v1775
      %v1777 = vpop.f32.mrb[0].mxu0
      %v1778 = vadd.f32 %v1728, %v1777
      %v1779 = vpop.f32.mrb[0].mxu0
      %v1780 = vpop.f32.mrb[0].mxu0
      %1781 = vdwg.mxu0
      %1782 = vrot.lane.b32.xlu0 %v1656, 15
      %v1783 = vpop.permute.xlu0 %1782
      %1784 = vrot.lane.b32.xlu0 %v1657, 15
      %v1785 = vpop.permute.xlu0 %1784
      %v1786 = vsel %vm589, %v1783, %v1785
      %v1787 = vsel %vm589, %v1785, %v1783
      %v1788 = vmul.f32 %v1787, %v593
      %v1789 = vmul.f32 %v1786, %v594
      %s1790 = scalar_lea.vmem %s6, 80
      %v1791 = vld [vmem:[%s1790] sm:$0xf]
      %v1792 = vpack.c.bf16 %v1788, %v1788
      %v1793 = vpack.c.bf16 %v1789, %v1789
      %v1795 = vsel %vm483, %v1791, 0
      %v1798 = vsel %vm487, %v1792, 0
      %v1801 = vsel %vm487, %v1793, 0
      %1803 = vmatprep.subr.bf16.mxu0 %v1801
      %1804 = vmatpush1.bf16.msra.mxu0 %v1798
      %1805 = vmatprep.subr.bf16.mxu0 0
      %1806 = vmatpush1.bf16.msra.mxu0 0
      %1807 = vmatprep.subr.bf16.mxu0 0
      %1808 = vmatpush1.bf16.msra.mxu0 0
      %1809 = vmatprep.subr.bf16.mxu0 0
      %1810 = vmatpush1.bf16.msra.mxu0 0
      %1811 = vmatprep.subr.bf16.mxu0 0
      %1812 = vmatpush1.bf16.msra.mxu0 0
      %1813 = vmatprep.subr.bf16.mxu0 0
      %1814 = vmatpush1.bf16.msra.mxu0 0
      %1815 = vmatprep.subr.bf16.mxu0 0
      %1816 = vmatpush1.bf16.msra.mxu0 0
      %1817 = vmatprep.subr.bf16.mxu0 0
      %1818 = vmatpush1.bf16.msra.mxu0 0
      %1819 = vmatprep.subr.bf16.mxu0 0
      %1820 = vmatpush1.bf16.msra.mxu0 0
      %1821 = vmatprep.subr.bf16.mxu0 0
      %1822 = vmatpush1.bf16.msra.mxu0 0
      %1823 = vmatprep.subr.bf16.mxu0 0
      %1824 = vmatpush1.bf16.msra.mxu0 0
      %1825 = vmatprep.subr.bf16.mxu0 0
      %1826 = vmatpush1.bf16.msra.mxu0 0
      %1827 = vmatprep.subr.bf16.mxu0 0
      %1828 = vmatpush1.bf16.msra.mxu0 0
      %1829 = vmatprep.subr.bf16.mxu0 0
      %1830 = vmatpush1.bf16.msra.mxu0 0
      %1831 = vmatprep.subr.bf16.mxu0 0
      %1832 = vmatpush1.bf16.msra.mxu0 0
      %1833 = vmatprep.subr.bf16.mxu0 0
      %1834 = vmatpush1.bf16.msra.mxu0 0
      %1835 = vmatprep.mubr.bf16.mxu0 0
      %1836 = vmatmul.mubr.bf16.gmra.mrb[0].mxu0 %v1795
      %v1837 = vpop.f32.mrb[0].mxu0
      %v1838 = vadd.f32 0.0, %v1837
      %v1839 = vpop.f32.mrb[0].mxu0
      %v1840 = vadd.f32 0.0, %v1839
      %v1841 = vpop.f32.mrb[0].mxu0
      %v1842 = vpop.f32.mrb[0].mxu0
      %1843 = vdwg.mxu0
      %v1844 = vadd.f32 %v1776, %v1838
      %v1845 = vadd.f32 %v1778, %v1840
      %1846 = vrot.lane.b32.xlu0 %v1656, 1
      %v1847 = vpop.permute.xlu0 %1846
      %1848 = vrot.lane.b32.xlu0 %v1657, 1
      %v1849 = vpop.permute.xlu0 %1848
      %v1850 = vsel %vm657, %v1847, %v1849
      %v1851 = vsel %vm657, %v1849, %v1847
      %v1852 = vmul.f32 %v1851, %v661
      %v1853 = vmul.f32 %v1850, %v662
      %s1854 = scalar_lea.vmem %s6, 84
      %v1855 = vld [vmem:[%s1854] sm:$0xf]
      %v1856 = vpack.c.bf16 %v1852, %v1852
      %v1857 = vpack.c.bf16 %v1853, %v1853
      %v1859 = vsel %vm483, %v1855, 0
      %v1862 = vsel %vm487, %v1856, 0
      %v1865 = vsel %vm487, %v1857, 0
      %1867 = vmatprep.subr.bf16.mxu0 %v1865
      %1868 = vmatpush1.bf16.msra.mxu0 %v1862
      %1869 = vmatprep.subr.bf16.mxu0 0
      %1870 = vmatpush1.bf16.msra.mxu0 0
      %1871 = vmatprep.subr.bf16.mxu0 0
      %1872 = vmatpush1.bf16.msra.mxu0 0
      %1873 = vmatprep.subr.bf16.mxu0 0
      %1874 = vmatpush1.bf16.msra.mxu0 0
      %1875 = vmatprep.subr.bf16.mxu0 0
      %1876 = vmatpush1.bf16.msra.mxu0 0
      %1877 = vmatprep.subr.bf16.mxu0 0
      %1878 = vmatpush1.bf16.msra.mxu0 0
      %1879 = vmatprep.subr.bf16.mxu0 0
      %1880 = vmatpush1.bf16.msra.mxu0 0
      %1881 = vmatprep.subr.bf16.mxu0 0
      %1882 = vmatpush1.bf16.msra.mxu0 0
      %1883 = vmatprep.subr.bf16.mxu0 0
      %1884 = vmatpush1.bf16.msra.mxu0 0
      %1885 = vmatprep.subr.bf16.mxu0 0
      %1886 = vmatpush1.bf16.msra.mxu0 0
      %1887 = vmatprep.subr.bf16.mxu0 0
      %1888 = vmatpush1.bf16.msra.mxu0 0
      %1889 = vmatprep.subr.bf16.mxu0 0
      %1890 = vmatpush1.bf16.msra.mxu0 0
      %1891 = vmatprep.subr.bf16.mxu0 0
      %1892 = vmatpush1.bf16.msra.mxu0 0
      %1893 = vmatprep.subr.bf16.mxu0 0
      %1894 = vmatpush1.bf16.msra.mxu0 0
      %1895 = vmatprep.subr.bf16.mxu0 0
      %1896 = vmatpush1.bf16.msra.mxu0 0
      %1897 = vmatprep.subr.bf16.mxu0 0
      %1898 = vmatpush1.bf16.msra.mxu0 0
      %1899 = vmatprep.mubr.bf16.mxu0 0
      %1900 = vmatmul.mubr.bf16.gmra.mrb[0].mxu0 %v1859
      %v1901 = vpop.f32.mrb[0].mxu0
      %v1902 = vadd.f32 0.0, %v1901
      %v1903 = vpop.f32.mrb[0].mxu0
      %v1904 = vadd.f32 0.0, %v1903
      %v1905 = vpop.f32.mrb[0].mxu0
      %v1906 = vpop.f32.mrb[0].mxu0
      %1907 = vdwg.mxu0
      %v1908 = vadd.f32 %v1844, %v1902
      %v1909 = vadd.f32 %v1845, %v1904
      %s1910 = scalar_lea.vmem %s6, 88
      %v1911 = vld [vmem:[%s1910] sm:$0xf]
      %v1912 = vpack.c.bf16 %v1656, %v1656
      %v1913 = vpack.c.bf16 %v1657, %v1657
      %v1915 = vsel %vm483, %v1911, 0
      %v1918 = vsel %vm487, %v1912, 0
      %v1921 = vsel %vm487, %v1913, 0
      %1923 = vmatprep.subr.bf16.mxu0 %v1921
      %1924 = vmatpush1.bf16.msra.mxu0 %v1918
      %1925 = vmatprep.subr.bf16.mxu0 0
      %1926 = vmatpush1.bf16.msra.mxu0 0
      %1927 = vmatprep.subr.bf16.mxu0 0
      %1928 = vmatpush1.bf16.msra.mxu0 0
      %1929 = vmatprep.subr.bf16.mxu0 0
      %1930 = vmatpush1.bf16.msra.mxu0 0
      %1931 = vmatprep.subr.bf16.mxu0 0
      %1932 = vmatpush1.bf16.msra.mxu0 0
      %1933 = vmatprep.subr.bf16.mxu0 0
      %1934 = vmatpush1.bf16.msra.mxu0 0
      %1935 = vmatprep.subr.bf16.mxu0 0
      %1936 = vmatpush1.bf16.msra.mxu0 0
      %1937 = vmatprep.subr.bf16.mxu0 0
      %1938 = vmatpush1.bf16.msra.mxu0 0
      %1939 = vmatprep.subr.bf16.mxu0 0
      %1940 = vmatpush1.bf16.msra.mxu0 0
      %1941 = vmatprep.subr.bf16.mxu0 0
      %1942 = vmatpush1.bf16.msra.mxu0 0
      %1943 = vmatprep.subr.bf16.mxu0 0
      %1944 = vmatpush1.bf16.msra.mxu0 0
      %1945 = vmatprep.subr.bf16.mxu0 0
      %1946 = vmatpush1.bf16.msra.mxu0 0
      %1947 = vmatprep.subr.bf16.mxu0 0
      %1948 = vmatpush1.bf16.msra.mxu0 0
      %1949 = vmatprep.subr.bf16.mxu0 0
      %1950 = vmatpush1.bf16.msra.mxu0 0
      %1951 = vmatprep.subr.bf16.mxu0 0
      %1952 = vmatpush1.bf16.msra.mxu0 0
      %1953 = vmatprep.subr.bf16.mxu0 0
      %1954 = vmatpush1.bf16.msra.mxu0 0
      %1955 = vmatprep.mubr.bf16.mxu0 0
      %1956 = vmatmul.mubr.bf16.gmra.mrb[0].mxu0 %v1915
      %v1957 = vpop.f32.mrb[0].mxu0
      %v1958 = vadd.f32 0.0, %v1957
      %v1959 = vpop.f32.mrb[0].mxu0
      %v1960 = vadd.f32 0.0, %v1959
      %v1961 = vpop.f32.mrb[0].mxu0
      %v1962 = vpop.f32.mrb[0].mxu0
      %1963 = vdwg.mxu0
      %v1964 = vadd.f32 %v1908, %v1958
      %v1965 = vadd.f32 %v1909, %v1960
      %1966 = vrot.lane.b32.xlu0 %v1656, 127
      %v1967 = vpop.permute.xlu0 %1966
      %1968 = vrot.lane.b32.xlu0 %v1657, 127
      %v1969 = vpop.permute.xlu0 %1968
      %v1970 = vsel %vm781, %v1967, %v1969
      %v1971 = vsel %vm781, %v1969, %v1967
      %v1972 = vmul.f32 %v1970, %v785
      %v1973 = vmul.f32 %v1971, %v786
      %s1974 = scalar_lea.vmem %s6, 92
      %v1975 = vld [vmem:[%s1974] sm:$0xf]
      %v1976 = vpack.c.bf16 %v1972, %v1972
      %v1977 = vpack.c.bf16 %v1973, %v1973
      %v1979 = vsel %vm483, %v1975, 0
      %v1982 = vsel %vm487, %v1976, 0
      %v1985 = vsel %vm487, %v1977, 0
      %1987 = vmatprep.subr.bf16.mxu0 %v1985
      %1988 = vmatpush1.bf16.msra.mxu0 %v1982
      %1989 = vmatprep.subr.bf16.mxu0 0
      %1990 = vmatpush1.bf16.msra.mxu0 0
      %1991 = vmatprep.subr.bf16.mxu0 0
      %1992 = vmatpush1.bf16.msra.mxu0 0
      %1993 = vmatprep.subr.bf16.mxu0 0
      %1994 = vmatpush1.bf16.msra.mxu0 0
      %1995 = vmatprep.subr.bf16.mxu0 0
      %1996 = vmatpush1.bf16.msra.mxu0 0
      %1997 = vmatprep.subr.bf16.mxu0 0
      %1998 = vmatpush1.bf16.msra.mxu0 0
      %1999 = vmatprep.subr.bf16.mxu0 0
      %2000 = vmatpush1.bf16.msra.mxu0 0
      %2001 = vmatprep.subr.bf16.mxu0 0
      %2002 = vmatpush1.bf16.msra.mxu0 0
      %2003 = vmatprep.subr.bf16.mxu0 0
      %2004 = vmatpush1.bf16.msra.mxu0 0
      %2005 = vmatprep.subr.bf16.mxu0 0
      %2006 = vmatpush1.bf16.msra.mxu0 0
      %2007 = vmatprep.subr.bf16.mxu0 0
      %2008 = vmatpush1.bf16.msra.mxu0 0
      %2009 = vmatprep.subr.bf16.mxu0 0
      %2010 = vmatpush1.bf16.msra.mxu0 0
      %2011 = vmatprep.subr.bf16.mxu0 0
      %2012 = vmatpush1.bf16.msra.mxu0 0
      %2013 = vmatprep.subr.bf16.mxu0 0
      %2014 = vmatpush1.bf16.msra.mxu0 0
      %2015 = vmatprep.subr.bf16.mxu0 0
      %2016 = vmatpush1.bf16.msra.mxu0 0
      %2017 = vmatprep.subr.bf16.mxu0 0
      %2018 = vmatpush1.bf16.msra.mxu0 0
      %2019 = vmatprep.mubr.bf16.mxu0 0
      %2020 = vmatmul.mubr.bf16.gmra.mrb[0].mxu0 %v1979
      %v2021 = vpop.f32.mrb[0].mxu0
      %v2022 = vadd.f32 0.0, %v2021
      %v2023 = vpop.f32.mrb[0].mxu0
      %v2024 = vadd.f32 0.0, %v2023
      %v2025 = vpop.f32.mrb[0].mxu0
      %v2026 = vpop.f32.mrb[0].mxu0
      %2027 = vdwg.mxu0
      %v2028 = vadd.f32 %v1964, %v2022
      %v2029 = vadd.f32 %v1965, %v2024
      %2030 = vrot.lane.b32.xlu0 %v1656, 113
      %v2031 = vpop.permute.xlu0 %2030
      %2032 = vrot.lane.b32.xlu0 %v1657, 113
      %v2033 = vpop.permute.xlu0 %2032
      %v2034 = vsel %vm849, %v2031, %v2033
      %v2035 = vsel %vm849, %v2033, %v2031
      %v2036 = vmul.f32 %v2034, %v853
      %v2037 = vmul.f32 %v2035, %v854
      %s2038 = scalar_lea.vmem %s6, 96
      %v2039 = vld [vmem:[%s2038] sm:$0xf]
      %v2040 = vpack.c.bf16 %v2036, %v2036
      %v2041 = vpack.c.bf16 %v2037, %v2037
      %v2043 = vsel %vm483, %v2039, 0
      %v2046 = vsel %vm487, %v2040, 0
      %v2049 = vsel %vm487, %v2041, 0
      %2051 = vmatprep.subr.bf16.mxu0 %v2049
      %2052 = vmatpush1.bf16.msra.mxu0 %v2046
      %2053 = vmatprep.subr.bf16.mxu0 0
      %2054 = vmatpush1.bf16.msra.mxu0 0
      %2055 = vmatprep.subr.bf16.mxu0 0
      %2056 = vmatpush1.bf16.msra.mxu0 0
      %2057 = vmatprep.subr.bf16.mxu0 0
      %2058 = vmatpush1.bf16.msra.mxu0 0
      %2059 = vmatprep.subr.bf16.mxu0 0
      %2060 = vmatpush1.bf16.msra.mxu0 0
      %2061 = vmatprep.subr.bf16.mxu0 0
      %2062 = vmatpush1.bf16.msra.mxu0 0
      %2063 = vmatprep.subr.bf16.mxu0 0
      %2064 = vmatpush1.bf16.msra.mxu0 0
      %2065 = vmatprep.subr.bf16.mxu0 0
      %2066 = vmatpush1.bf16.msra.mxu0 0
      %2067 = vmatprep.subr.bf16.mxu0 0
      %2068 = vmatpush1.bf16.msra.mxu0 0
      %2069 = vmatprep.subr.bf16.mxu0 0
      %2070 = vmatpush1.bf16.msra.mxu0 0
      %2071 = vmatprep.subr.bf16.mxu0 0
      %2072 = vmatpush1.bf16.msra.mxu0 0
      %2073 = vmatprep.subr.bf16.mxu0 0
      %2074 = vmatpush1.bf16.msra.mxu0 0
      %2075 = vmatprep.subr.bf16.mxu0 0
      %2076 = vmatpush1.bf16.msra.mxu0 0
      %2077 = vmatprep.subr.bf16.mxu0 0
      %2078 = vmatpush1.bf16.msra.mxu0 0
      %2079 = vmatprep.subr.bf16.mxu0 0
      %2080 = vmatpush1.bf16.msra.mxu0 0
      %2081 = vmatprep.subr.bf16.mxu0 0
      %2082 = vmatpush1.bf16.msra.mxu0 0
      %2083 = vmatprep.mubr.bf16.mxu0 0
      %2084 = vmatmul.mubr.bf16.gmra.mrb[0].mxu0 %v2043
      %v2085 = vpop.f32.mrb[0].mxu0
      %v2086 = vadd.f32 0.0, %v2085
      %v2087 = vpop.f32.mrb[0].mxu0
      %v2088 = vadd.f32 0.0, %v2087
      %v2089 = vpop.f32.mrb[0].mxu0
      %v2090 = vpop.f32.mrb[0].mxu0
      %2091 = vdwg.mxu0
      %v2092 = vadd.f32 %v2028, %v2086
      %v2093 = vadd.f32 %v2029, %v2088
      %2094 = vrot.lane.b32.xlu0 %v1656, 112
      %v2095 = vpop.permute.xlu0 %2094
      %2096 = vrot.lane.b32.xlu0 %v1657, 112
      %v2097 = vpop.permute.xlu0 %2096
      %v2098 = vsel %vm917, %v2095, %v2097
      %v2099 = vsel %vm917, %v2097, %v2095
      %v2100 = vmul.f32 %v2098, %v921
      %v2101 = vmul.f32 %v2099, %v922
      %s2102 = scalar_lea.vmem %s6, 100
      %v2103 = vld [vmem:[%s2102] sm:$0xf]
      %v2104 = vpack.c.bf16 %v2100, %v2100
      %v2105 = vpack.c.bf16 %v2101, %v2101
      %v2107 = vsel %vm483, %v2103, 0
      %v2110 = vsel %vm487, %v2104, 0
      %v2113 = vsel %vm487, %v2105, 0
      %2115 = vmatprep.subr.bf16.mxu0 %v2113
      %2116 = vmatpush1.bf16.msra.mxu0 %v2110
      %2117 = vmatprep.subr.bf16.mxu0 0
      %2118 = vmatpush1.bf16.msra.mxu0 0
      %2119 = vmatprep.subr.bf16.mxu0 0
      %2120 = vmatpush1.bf16.msra.mxu0 0
      %2121 = vmatprep.subr.bf16.mxu0 0
      %2122 = vmatpush1.bf16.msra.mxu0 0
      %2123 = vmatprep.subr.bf16.mxu0 0
      %2124 = vmatpush1.bf16.msra.mxu0 0
      %2125 = vmatprep.subr.bf16.mxu0 0
      %2126 = vmatpush1.bf16.msra.mxu0 0
      %2127 = vmatprep.subr.bf16.mxu0 0
      %2128 = vmatpush1.bf16.msra.mxu0 0
      %2129 = vmatprep.subr.bf16.mxu0 0
      %2130 = vmatpush1.bf16.msra.mxu0 0
      %2131 = vmatprep.subr.bf16.mxu0 0
      %2132 = vmatpush1.bf16.msra.mxu0 0
      %2133 = vmatprep.subr.bf16.mxu0 0
      %2134 = vmatpush1.bf16.msra.mxu0 0
      %2135 = vmatprep.subr.bf16.mxu0 0
      %2136 = vmatpush1.bf16.msra.mxu0 0
      %2137 = vmatprep.subr.bf16.mxu0 0
      %2138 = vmatpush1.bf16.msra.mxu0 0
      %2139 = vmatprep.subr.bf16.mxu0 0
      %2140 = vmatpush1.bf16.msra.mxu0 0
      %2141 = vmatprep.subr.bf16.mxu0 0
      %2142 = vmatpush1.bf16.msra.mxu0 0
      %2143 = vmatprep.subr.bf16.mxu0 0
      %2144 = vmatpush1.bf16.msra.mxu0 0
      %2145 = vmatprep.subr.bf16.mxu0 0
      %2146 = vmatpush1.bf16.msra.mxu0 0
      %2147 = vmatprep.mubr.bf16.mxu0 0
      %2148 = vmatmul.mubr.bf16.gmra.mrb[0].mxu0 %v2107
      %v2149 = vpop.f32.mrb[0].mxu0
      %v2150 = vadd.f32 0.0, %v2149
      %v2151 = vpop.f32.mrb[0].mxu0
      %v2152 = vadd.f32 0.0, %v2151
      %v2153 = vpop.f32.mrb[0].mxu0
      %v2154 = vpop.f32.mrb[0].mxu0
      %2155 = vdwg.mxu0
      %v2156 = vadd.f32 %v2092, %v2150
      %v2157 = vadd.f32 %v2093, %v2152
      %2158 = vrot.lane.b32.xlu0 %v1656, 111
      %v2159 = vpop.permute.xlu0 %2158
      %2160 = vrot.lane.b32.xlu0 %v1657, 111
      %v2161 = vpop.permute.xlu0 %2160
      %v2162 = vsel %vm985, %v2159, %v2161
      %v2163 = vsel %vm985, %v2161, %v2159
      %v2164 = vmul.f32 %v2162, %v989
      %v2165 = vmul.f32 %v2163, %v990
      %s2166 = scalar_lea.vmem %s6, 104
      %v2167 = vld [vmem:[%s2166] sm:$0xf]
      %v2168 = vpack.c.bf16 %v2164, %v2164
      %v2169 = vpack.c.bf16 %v2165, %v2165
      %v2171 = vsel %vm483, %v2167, 0
      %v2174 = vsel %vm487, %v2168, 0
      %v2177 = vsel %vm487, %v2169, 0
      %2179 = vmatprep.subr.bf16.mxu0 %v2177
      %2180 = vmatpush1.bf16.msra.mxu0 %v2174
      %2181 = vmatprep.subr.bf16.mxu0 0
      %2182 = vmatpush1.bf16.msra.mxu0 0
      %2183 = vmatprep.subr.bf16.mxu0 0
      %2184 = vmatpush1.bf16.msra.mxu0 0
      %2185 = vmatprep.subr.bf16.mxu0 0
      %2186 = vmatpush1.bf16.msra.mxu0 0
      %2187 = vmatprep.subr.bf16.mxu0 0
      %2188 = vmatpush1.bf16.msra.mxu0 0
      %2189 = vmatprep.subr.bf16.mxu0 0
      %2190 = vmatpush1.bf16.msra.mxu0 0
      %2191 = vmatprep.subr.bf16.mxu0 0
      %2192 = vmatpush1.bf16.msra.mxu0 0
      %2193 = vmatprep.subr.bf16.mxu0 0
      %2194 = vmatpush1.bf16.msra.mxu0 0
      %2195 = vmatprep.subr.bf16.mxu0 0
      %2196 = vmatpush1.bf16.msra.mxu0 0
      %2197 = vmatprep.subr.bf16.mxu0 0
      %2198 = vmatpush1.bf16.msra.mxu0 0
      %2199 = vmatprep.subr.bf16.mxu0 0
      %2200 = vmatpush1.bf16.msra.mxu0 0
      %2201 = vmatprep.subr.bf16.mxu0 0
      %2202 = vmatpush1.bf16.msra.mxu0 0
      %2203 = vmatprep.subr.bf16.mxu0 0
      %2204 = vmatpush1.bf16.msra.mxu0 0
      %2205 = vmatprep.subr.bf16.mxu0 0
      %2206 = vmatpush1.bf16.msra.mxu0 0
      %2207 = vmatprep.subr.bf16.mxu0 0
      %2208 = vmatpush1.bf16.msra.mxu0 0
      %2209 = vmatprep.subr.bf16.mxu0 0
      %2210 = vmatpush1.bf16.msra.mxu0 0
      %2211 = vmatprep.mubr.bf16.mxu0 0
      %2212 = vmatmul.mubr.bf16.gmra.mrb[0].mxu0 %v2171
      %v2213 = vpop.f32.mrb[0].mxu0
      %v2214 = vadd.f32 0.0, %v2213
      %v2215 = vpop.f32.mrb[0].mxu0
      %v2216 = vadd.f32 0.0, %v2215
      %v2217 = vpop.f32.mrb[0].mxu0
      %v2218 = vpop.f32.mrb[0].mxu0
      %2219 = vdwg.mxu0
      %v2220 = vadd.f32 %v2156, %v2214
      %v2221 = vadd.f32 %v2157, %v2216
      %s2222 = scalar_lea.vmem %s7, 16
      %v2223 = vld [vmem:[%s2222] sm:$0xff]
      %2225 = vset.pattern.permute.xlu0 0
      %2226 = vperm.xlu0 %2225, %v2223
      %v2227 = vpop.permute.xlu0 %2226
      %v2229 = vadd.f32 %v2220, %v2227
      %v2230 = vadd.f32 %v2221, %v2227
      %v2231 = vxor.u32 %v2229, 2147483648
      %v2232 = vxor.u32 %v2230, 2147483648
      %v2233 = vmul.f32 %v2231, 1.442695
      %v2234 = vpow.pop %v2233
      %v2235 = vmul.f32 %v2232, 1.442695
      %v2236 = vpow.pop %v2235
      %v2237 = vadd.f32 %v2234, 1.0
      %v2238 = vadd.f32 %v2236, 1.0
      %v2239 = vrcp.pop %v2237
      %v2240 = vmul.f32 1.0, %v2239
      %v2241 = vrcp.pop %v2238
      %v2242 = vmul.f32 1.0, %v2241
      %v2243 = vmul.f32 %v2229, %v2240
      %v2244 = vmul.f32 %v2230, %v2242
      %v2245 = vadd.f32 %v2243, %v449
      %v2246 = vadd.f32 %v2244, %v450
      %2247 = vst [vmem:[%s305] sm:$0xff] %v2245
      %2248 = vst [vmem:[%s305 + $0x8] sm:$0xff] %v2246
      %p2249 = scmp.lt.s32.totalorder %s19, 1
      %s2250 = scalar_select %p2249, %s19, 1
      %s2251 = smul.addr %s2250, 2
      %s2252 = smul.addr %s2251, 8
      %s2253 = scalar_lea.vmem %s8, %s2252
      // Predicated region
      $region53: #{repc3_forward.1} parent=51 // pred_check
        %p2254 = pneg %p210
      $region54: #{repc3_forward.1} parent=51 // pred_check_branch
        %2256 = sbr.rel (%p2254) target = $region56
      $region55: #{repc3_forward.1} parent=51 // pred_region
        _
      $region56: #{repc3_forward.1} parent=51 // pred_fallthru
        _
    $region52: #{repc3_forward.1} parent=5 // pred_fallthru
      _
    %p2257 = scmp.le.s32.totalorder 2, %s14
    // Predicated region
    $region57: #{repc3_forward.1} parent=5 // pred_check
      %p2258 = pneg %p2257
    $region58: #{repc3_forward.1} parent=5 // pred_check_branch
      %2260 = sbr.rel (%p2258) target = $region60
    $region59: #{repc3_forward.1} parent=5 // pred_region
      %s2261 = ssub.s32 %s14, 2
      // Predicated region
      $region61: #{repc3_forward.1} parent=59 // pred_check
        %p2262 = pneg %p216
      $region62: #{repc3_forward.1} parent=59 // pred_check_branch
        %2264 = sbr.rel (%p2262) target = $region64
      $region63: #{repc3_forward.1} parent=59 // pred_region
        %p2265 = scmp.lt.s32.totalorder %s20, 1
        %s2266 = scalar_select %p2265, %s20, 1
        %s2267 = smul.addr %s2266, 2
        %s2268 = smul.addr %s2267, 8
        %s2269 = scalar_lea.vmem %s8, %s2268
      $region64: #{repc3_forward.1} parent=59 // pred_fallthru
        _
    $region60: #{repc3_forward.1} parent=5 // pred_fallthru
      _
  $region6: #{repc3_forward.1} parent=0 // loop_footer
    %s18 = sadd.s32 1, %s14
  $region7: #{repc3_forward.1} parent=0 // loop_footer_branch
    %13 = sbr.rel target = $region3
  $region8: #{repc3_forward.1} parent=0 // loop_exit
    _

</llo_original>
